<compile_context>
chip_gen: v6e
topology: v6e:2x2x1
jax: 0.10.0
libtpu: 0.0.40
codegen_flags: <defaults>
</compile_context>

<pallas_src>
import jax
import jax.numpy as jnp
from jax.experimental import pallas as pl
from jax.experimental.pallas import tpu as pltpu


def _round_up(v, m):
    return ((v + m - 1) // m) * m


def _vmem_bytes(shape, itemsize):
    """Rough VMEM footprint of a block (minor dim padded to 128 lanes, 2nd-minor to 8)."""
    dims = list(shape)
    dims[-1] = _round_up(dims[-1], 128)
    if len(dims) >= 2:
        dims[-2] = _round_up(dims[-2], 8)
    n = itemsize
    for d in dims:
        n *= d
    return n


def _choose_row_tile(ho, wo, wp, c, kh, kw, stride, d_pad, cbytes, obytes, budget):
    """Largest divisor-of-Ho row tile whose (double-buffered) blocks fit the VMEM budget,
    preferring >= 2 row tiles so the pipeline and both v7x TensorCores have work."""
    kpatch = kh * kw * c
    candidates = []
    for th in range(1, ho + 1):
        if ho % th:
            continue
        if (th * wo) % 8 and th != ho:           # output-block sublane constraint
            continue
        th_in = (th - 1) * stride + kh
        fp = (2 * _vmem_bytes((th_in, wp, c), cbytes)       # input block, double-buffered
              + 2 * _vmem_bytes((th * wo, d_pad), obytes)   # output block, double-buffered
              + 2 * _vmem_bytes((kpatch, d_pad), cbytes)    # weight (grid-invariant)
              + _vmem_bytes((th * wo, kpatch), cbytes))     # patch tile / accumulator
        candidates.append((th, fp))
    fitting = [th for th, fp in candidates if fp <= budget]
    if not fitting:
        return min(th for th, _ in candidates)
    multi = [th for th in fitting if ho // th >= 2]
    return max(multi) if multi else max(fitting)


def _make_fused_patch_kernel(kh, kw, c, th, wo, stride):
    """Shallow-C path: build (th*wo, kh*kw*C) patch in VMEM, one deep MXU matmul."""

    def kernel(x_ref, w_ref, o_ref):
        # x_ref: (th_in, Wp, C) bf16 row block incl. halo; w_ref: (kh*kw*C, d_pad) bf16
        taps = []
        for ki in range(kh):
            for kj in range(kw):
                if stride == 1:
                    tap = x_ref[pl.ds(ki, th), pl.ds(kj, wo), :]
                else:
                    # TODO(synk): for stride>1 stem layers, a wrapper space-to-depth
                    # (fold the stride^2 pixel block into C) would avoid strided
                    # sublane loads here and deepen the lane/contraction dim.
                    tap = x_ref[pl.ds(ki, th, stride), pl.ds(kj, wo, stride), :]
                taps.append(tap.reshape(th * wo, c))
        patch = jnp.concatenate(taps, axis=-1)               # (th*wo, kh*kw*C)
        o_ref[...] = jnp.dot(patch, w_ref[...],
                             preferred_element_type=jnp.float32).astype(o_ref.dtype)

    return kernel


def _make_per_tap_kernel(kh, kw, c, th, wo, stride):
    """Deep-C path (C >= 256): per-tap dots (K = C already deep) accumulated in a
    VMEM f32 scratch — avoids materializing the full (rows, kh*kw*C) patch."""

    def kernel(x_ref, w_ref, o_ref, acc_ref):
        acc_ref[...] = jnp.zeros_like(acc_ref)
        for ki in range(kh):
            for kj in range(kw):
                if stride == 1:
                    tap = x_ref[pl.ds(ki, th), pl.ds(kj, wo), :]
                else:
                    tap = x_ref[pl.ds(ki, th, stride), pl.ds(kj, wo, stride), :]
                t = ki * kw + kj
                acc_ref[...] += jnp.dot(tap.reshape(th * wo, c),
                                        w_ref[pl.ds(t * c, c), :],
                                        preferred_element_type=jnp.float32)
        o_ref[...] = acc_ref[...].astype(o_ref.dtype)

    return kernel


def standard_conv2d(x, weight, stride=1, padding=1,
                    compute_dtype=jnp.bfloat16, out_dtype=jnp.float32,
                    vmem_budget_bytes=24 * 1024 * 1024, fuse_taps=None):
    """torch.nn.Conv2d(in_c, d_j, k, stride, padding, bias=False) forward.

    x:      (N, C, H, W)      float32
    weight: (d_j, C, kh, kw)  float32
    returns (N, d_j, Ho, Wo)  out_dtype (f32 default; bfloat16 halves output HBM bytes)
    """
    n, c, h, w = x.shape
    d_j, c_w, kh, kw = weight.shape
    assert c == c_w

    ho = (h + 2 * padding - kh) // stride + 1
    wo = (w + 2 * padding - kw) // stride + 1
    hp, wp = h + 2 * padding, w + 2 * padding
    d_pad = _round_up(max(d_j, 128), 128)      # lane-dense output -> full vst stores
    kpatch = kh * kw * c

    cbytes = jnp.dtype(compute_dtype).itemsize
    obytes = jnp.dtype(out_dtype).itemsize
    th = _choose_row_tile(ho, wo, wp, c, kh, kw, stride, d_pad,
                          cbytes, obytes, vmem_budget_bytes)
    rt = ho // th
    th_in = (th - 1) * stride + kh             # input rows incl. (kh - stride) halo

    # ---- Prologue: ONE fused XLA pass. NCHW->NHWC, zero spatial pad, bf16 cast,
    # and gather the row blocks with halos duplicated so the kernel's BlockSpec
    # stays plain Blocked indexing (no overlapping-window index_maps needed).
    x_nhwc = jnp.pad(jnp.transpose(x, (0, 2, 3, 1)),
                     ((0, 0), (padding, padding), (padding, padding), (0, 0)))
    x_nhwc = x_nhwc.astype(compute_dtype)
    x_blocks = jnp.stack(
        [x_nhwc[:, r * th * stride: r * th * stride + th_in] for r in range(rt)],
        axis=1)                                               # (N, rt, th_in, Wp, C)

    # Weight -> (kh*kw*C, d_pad): row (ki*kw+kj)*C + ci matches the patch column layout.
    w2d = jnp.transpose(weight, (2, 3, 1, 0)).reshape(kpatch, d_j)
    w2d = jnp.pad(w2d, ((0, 0), (0, d_pad - d_j))).astype(compute_dtype)

    if fuse_taps is None:
        fuse_taps = c < 256        # shallow channels: collapse taps into one deep matmul
    if fuse_taps:
        kernel = _make_fused_patch_kernel(kh, kw, c, th, wo, stride)
        scratch = []
    else:
        kernel = _make_per_tap_kernel(kh, kw, c, th, wo, stride)
        scratch = [pltpu.VMEM((th * wo, d_pad), jnp.float32)]

    vmem_limit = int(min(100 * 1024 * 1024,
                         max(32 * 1024 * 1024, 2 * vmem_budget_bytes)))

    out = pl.pallas_call(
        kernel,
        out_shape=jax.ShapeDtypeStruct((n, ho * wo, d_pad), out_dtype),
        grid_spec=pltpu.PrefetchScalarGridSpec(
            num_scalar_prefetch=0,
            grid=(n, rt),
            in_specs=[
                # One halo-duplicated row block per step.
                pl.BlockSpec((None, None, th_in, wp, c),
                             lambda i, r: (i, r, 0, 0, 0)),
                # Grid-invariant weight (constant index_map -> DMA'd once).  For
                # large C*d_pad weights on v7x, pipeline_mode=pl.Buffered(1) would
                # reclaim the never-used second buffer.
                pl.BlockSpec((kpatch, d_pad), lambda i, r: (0, 0)),
            ],
            out_specs=pl.BlockSpec((None, th * wo, d_pad), lambda i, r: (i, r, 0)),
            scratch_shapes=scratch,
        ),
        compiler_params=pltpu.CompilerParams(
            # Both axes independent -> N*rt parallel steps for megacore sharding
            # (v7x: 2 TensorCores) and deep software pipelining.
            dimension_semantics=("parallel", "parallel"),
            vmem_limit_bytes=vmem_limit,
        ),
    )(x_blocks, w2d)

    # ---- Epilogue: trim lane padding, restore torch's NCHW layout.
    # Drop the transpose if the consumer accepts channels-last (saves an HBM pass).
    out = out[:, :, :d_j].reshape(n, ho, wo, d_j)
    return jnp.transpose(out, (0, 3, 1, 2))


if __name__ == "__main__":
    key = jax.random.PRNGKey(0)
    kx, kw_ = jax.random.split(key)

    N, C, H, W = 2, 4, 16, 16
    D_J, K = 64, 3

    x = jax.random.normal(kx, (N, C, H, W), dtype=jnp.float32)
    fan_in = C * K * K
    weight = jax.random.uniform(
        kw_, (D_J, C, K, K), dtype=jnp.float32,
        minval=-1.0 / (fan_in ** 0.5), maxval=1.0 / (fan_in ** 0.5),
    )

    y = standard_conv2d(x, weight, stride=1, padding=1)
    y = jax.block_until_ready(y)
    assert y.shape == (N, D_J, H, W)
    assert y.dtype == jnp.float32

    # Reference computed from the same bf16 operands with f32 accumulation, so the
    # comparison isolates kernel correctness from the intentional bf16 operand cast.
    y_ref_bf16 = jax.lax.conv_general_dilated(
        x.astype(jnp.bfloat16), weight.astype(jnp.bfloat16),
        window_strides=(1, 1), padding=((1, 1), (1, 1)),
        dimension_numbers=("NCHW", "OIHW", "NCHW"),
        preferred_element_type=jnp.float32,
    )
    assert jnp.allclose(y, y_ref_bf16, atol=1e-3, rtol=1e-3)

    # Loose sanity check against the full-f32 conv (bf16 cast error only).
    y_ref_f32 = jax.lax.conv_general_dilated(
        x, weight, window_strides=(1, 1), padding=((1, 1), (1, 1)),
        dimension_numbers=("NCHW", "OIHW", "NCHW"),
    )
    assert jnp.allclose(y, y_ref_f32, atol=5e-2, rtol=5e-2)

    print("KERNEL_OK")
</pallas_src>

<mosaic_0001>
module attributes {stable_mosaic.version = 11 : i64} {
  func.func @kernel(%arg0: i32, %arg1: i32, %arg2: memref<1x1x10x18x4xbf16, #tpu.memory_space<vmem>>, %arg3: memref<36x128xbf16, #tpu.memory_space<vmem>>, %arg4: memref<1x128x128xf32, #tpu.memory_space<vmem>>) attributes {dimension_semantics = [#tpu.dimension_semantics<parallel>, #tpu.dimension_semantics<parallel>], iteration_bounds = array<i64: 2, 2>, scalar_prefetch = 0 : i64, scratch_operands = 0 : i64, tpu.core_type = #tpu.core_type<tc>, window_params = [{transform_indices = @transform_0, window_bounds = array<i64: 1, 1, 10, 18, 4>}, {pipeline_mode = #tpu.pipeline_mode<synchronous>, transform_indices = @transform_1, window_bounds = array<i64: 36, 128>}, {transform_indices = @transform_2, window_bounds = array<i64: 1, 128, 128>}]} {
    %c0 = arith.constant 0 : index
    %c0_0 = arith.constant 0 : index
    %c0_1 = arith.constant 0 : index
    %c0_2 = arith.constant 0 : index
    %c0_3 = arith.constant 0 : index
    %0 = vector.load %arg2[%c0, %c0_0, %c0_1, %c0_2, %c0_3] : memref<1x1x10x18x4xbf16, #tpu.memory_space<vmem>>, vector<1x1x8x16x4xbf16>
    %1 = vector.shape_cast %0 : vector<1x1x8x16x4xbf16> to vector<8x16x4xbf16>
    %2 = vector.shape_cast %1 : vector<8x16x4xbf16> to vector<128x4xbf16>
    %c0_4 = arith.constant 0 : index
    %c0_5 = arith.constant 0 : index
    %c0_6 = arith.constant 0 : index
    %c1 = arith.constant 1 : index
    %c0_7 = arith.constant 0 : index
    %3 = vector.load %arg2[%c0_4, %c0_5, %c0_6, %c1, %c0_7] : memref<1x1x10x18x4xbf16, #tpu.memory_space<vmem>>, vector<1x1x8x16x4xbf16>
    %4 = vector.shape_cast %3 : vector<1x1x8x16x4xbf16> to vector<8x16x4xbf16>
    %5 = vector.shape_cast %4 : vector<8x16x4xbf16> to vector<128x4xbf16>
    %c0_8 = arith.constant 0 : index
    %c0_9 = arith.constant 0 : index
    %c0_10 = arith.constant 0 : index
    %c2 = arith.constant 2 : index
    %c0_11 = arith.constant 0 : index
    %6 = vector.load %arg2[%c0_8, %c0_9, %c0_10, %c2, %c0_11] : memref<1x1x10x18x4xbf16, #tpu.memory_space<vmem>>, vector<1x1x8x16x4xbf16>
    %7 = vector.shape_cast %6 : vector<1x1x8x16x4xbf16> to vector<8x16x4xbf16>
    %8 = vector.shape_cast %7 : vector<8x16x4xbf16> to vector<128x4xbf16>
    %c0_12 = arith.constant 0 : index
    %c0_13 = arith.constant 0 : index
    %c1_14 = arith.constant 1 : index
    %c0_15 = arith.constant 0 : index
    %c0_16 = arith.constant 0 : index
    %9 = vector.load %arg2[%c0_12, %c0_13, %c1_14, %c0_15, %c0_16] : memref<1x1x10x18x4xbf16, #tpu.memory_space<vmem>>, vector<1x1x8x16x4xbf16>
    %10 = vector.shape_cast %9 : vector<1x1x8x16x4xbf16> to vector<8x16x4xbf16>
    %11 = vector.shape_cast %10 : vector<8x16x4xbf16> to vector<128x4xbf16>
    %c0_17 = arith.constant 0 : index
    %c0_18 = arith.constant 0 : index
    %c1_19 = arith.constant 1 : index
    %c1_20 = arith.constant 1 : index
    %c0_21 = arith.constant 0 : index
    %12 = vector.load %arg2[%c0_17, %c0_18, %c1_19, %c1_20, %c0_21] : memref<1x1x10x18x4xbf16, #tpu.memory_space<vmem>>, vector<1x1x8x16x4xbf16>
    %13 = vector.shape_cast %12 : vector<1x1x8x16x4xbf16> to vector<8x16x4xbf16>
    %14 = vector.shape_cast %13 : vector<8x16x4xbf16> to vector<128x4xbf16>
    %c0_22 = arith.constant 0 : index
    %c0_23 = arith.constant 0 : index
    %c1_24 = arith.constant 1 : index
    %c2_25 = arith.constant 2 : index
    %c0_26 = arith.constant 0 : index
    %15 = vector.load %arg2[%c0_22, %c0_23, %c1_24, %c2_25, %c0_26] : memref<1x1x10x18x4xbf16, #tpu.memory_space<vmem>>, vector<1x1x8x16x4xbf16>
    %16 = vector.shape_cast %15 : vector<1x1x8x16x4xbf16> to vector<8x16x4xbf16>
    %17 = vector.shape_cast %16 : vector<8x16x4xbf16> to vector<128x4xbf16>
    %c0_27 = arith.constant 0 : index
    %c0_28 = arith.constant 0 : index
    %c2_29 = arith.constant 2 : index
    %c0_30 = arith.constant 0 : index
    %c0_31 = arith.constant 0 : index
    %18 = vector.load %arg2[%c0_27, %c0_28, %c2_29, %c0_30, %c0_31] : memref<1x1x10x18x4xbf16, #tpu.memory_space<vmem>>, vector<1x1x8x16x4xbf16>
    %19 = vector.shape_cast %18 : vector<1x1x8x16x4xbf16> to vector<8x16x4xbf16>
    %20 = vector.shape_cast %19 : vector<8x16x4xbf16> to vector<128x4xbf16>
    %c0_32 = arith.constant 0 : index
    %c0_33 = arith.constant 0 : index
    %c2_34 = arith.constant 2 : index
    %c1_35 = arith.constant 1 : index
    %c0_36 = arith.constant 0 : index
    %21 = vector.load %arg2[%c0_32, %c0_33, %c2_34, %c1_35, %c0_36] : memref<1x1x10x18x4xbf16, #tpu.memory_space<vmem>>, vector<1x1x8x16x4xbf16>
    %22 = vector.shape_cast %21 : vector<1x1x8x16x4xbf16> to vector<8x16x4xbf16>
    %23 = vector.shape_cast %22 : vector<8x16x4xbf16> to vector<128x4xbf16>
    %c0_37 = arith.constant 0 : index
    %c0_38 = arith.constant 0 : index
    %c2_39 = arith.constant 2 : index
    %c2_40 = arith.constant 2 : index
    %c0_41 = arith.constant 0 : index
    %24 = vector.load %arg2[%c0_37, %c0_38, %c2_39, %c2_40, %c0_41] : memref<1x1x10x18x4xbf16, #tpu.memory_space<vmem>>, vector<1x1x8x16x4xbf16>
    %25 = vector.shape_cast %24 : vector<1x1x8x16x4xbf16> to vector<8x16x4xbf16>
    %26 = vector.shape_cast %25 : vector<8x16x4xbf16> to vector<128x4xbf16>
    %27 = tpu.concatenate %2, %5, %8, %11, %14, %17, %20, %23, %26 in 1 : vector<128x4xbf16>, vector<128x4xbf16>, vector<128x4xbf16>, vector<128x4xbf16>, vector<128x4xbf16>, vector<128x4xbf16>, vector<128x4xbf16>, vector<128x4xbf16>, vector<128x4xbf16> -> vector<128x36xbf16>
    %c0_42 = arith.constant 0 : index
    %c0_43 = arith.constant 0 : index
    %28 = vector.load %arg3[%c0_42, %c0_43] : memref<36x128xbf16, #tpu.memory_space<vmem>>, vector<36x128xbf16>
    %cst = arith.constant dense<0.000000e+00> : vector<128x128xf32>
    %29 = tpu.matmul %27, %28, %cst {dimension_numbers = #tpu.dot_dimension_numbers<[1], [0], [0], [1], [0, 0, 1, 1], [], []>} : vector<128x36xbf16>, vector<36x128xbf16>, vector<128x128xf32> -> vector<128x128xf32>
    %c0_44 = arith.constant 0 : index
    %c0_45 = arith.constant 0 : index
    %c0_46 = arith.constant 0 : index
    %30 = vector.load %arg4[%c0_44, %c0_45, %c0_46] : memref<1x128x128xf32, #tpu.memory_space<vmem>>, vector<1x128x128xf32>
    %31 = vector.shape_cast %30 : vector<1x128x128xf32> to vector<128x128xf32>
    %32 = vector.shape_cast %29 : vector<128x128xf32> to vector<1x128x128xf32>
    tpu.vector_store %arg4[%c0_44, %c0_45, %c0_46], %32 {strides = array<i32>} : memref<1x128x128xf32, #tpu.memory_space<vmem>>, vector<1x128x128xf32>,
    return
  }
  func.func @transform_0(%arg0: i32, %arg1: i32) -> (i32, i32, i32, i32, i32) {
    %c0_i32 = arith.constant 0 : i32
    %c0_i32_0 = arith.constant 0 : i32
    %c0_i32_1 = arith.constant 0 : i32
    %c0_i32_2 = arith.constant 0 : i32
    return %arg0, %arg1, %c0_i32, %c0_i32_0, %c0_i32_1 : i32, i32, i32, i32, i32
  }
  func.func @transform_1(%arg0: i32, %arg1: i32) -> (i32, i32) {
    %c0_i32 = arith.constant 0 : i32
    %c0_i32_0 = arith.constant 0 : i32
    %c0_i32_1 = arith.constant 0 : i32
    return %c0_i32, %c0_i32_0 : i32, i32
  }
  func.func @transform_2(%arg0: i32, %arg1: i32) -> (i32, i32, i32) {
    %c0_i32 = arith.constant 0 : i32
    %c0_i32_0 = arith.constant 0 : i32
    return %arg0, %arg1, %c0_i32 : i32, i32, i32
  }
}

</mosaic_0001>

<llo_original>
// kernel: tpu_custom_call.1
$region0: #{tpu_custom_call.1}
  #allocation0 [shape = 'u32[]', space=smem, size = 0x4, offset = 0x4, fixed_abs, tag = 'smem constant byte address 0x4 - core index']
  #allocation1 [shape = 'u32[144,128]{1,0:T(1,128)}', space=vmem, size = 0x12000, scoped, tag = 'internal scratch']
  %s0 = inlined_call_operand.vmem [shape: bf16[2,2,10,18,4], index: 0, kind: input, shape index: {}]
  %s1 = inlined_call_operand.vmem [shape: bf16[36,128], index: 1, kind: input, shape index: {}]
  %s2 = inlined_call_operand.hbm [shape: f32[2,256,128], index: 2, kind: output, shape index: {}]
  %s3 = sld [smem:[#allocation0]]
  $region41: #{tpu_custom_call.1} parent=0
    _
  %s5 = ssub.s32 1, %s3
  %s6 = scalar_select 0, %s5, %s3
  $region1: #{tpu_custom_call.1} parent=0
    #allocation2 [shape = 'u8[131072]{0}', space=vmem, size = 0x20000, scoped, tag = 'output window, operand 0']
    #allocation3 [shape = 's32[2]{0}', space=sflag, size = 0x8, scoped, tag = 'scoped memory for tpu_custom_call.1']
    %7 = vsyncpa [#allocation3], 0
    %s8 = scalar_lea.sflag [#allocation3], 1
    %9 = vsyncpa %s8, 0
    loop: start=0, step=1, limit=6
    $region2: #{tpu_custom_call.1} parent=1 // loop_pre_header
      _
    $region3: #{tpu_custom_call.1} parent=1 // loop_header
      %s11 = sphi 0, %s15
      %p12 = scmp.ge.s32.totalorder %s11, 6
      %s18 = sphi 0, %s30
      %s19 = sphi 0, %s26
      %s20 = sphi 0, %s18
      %s21 = sphi 0, %s19
      %s22 = sphi 0, %s20
      %s23 = sphi 0, %s21
      %s35 = sphi 0, %s37
      %s38 = sphi 0, %s35
      %s39 = sphi 0, %s38
      %s55 = sphi 0, %s39
      %s59 = sphi 0, %s59
      %s61 = sphi 0, %s59
      %s62 = sphi 0, %s61
      %s76 = sphi 0, %s62
      %s84 = sphi 0, %s86
      %s87 = sphi 0, %s84
      %s88 = sphi 0, %s87
      %s104 = sphi 0, %s88
    $region4: #{tpu_custom_call.1} parent=1 // loop_header_branch
      %14 = sbr.rel (%p12) target = $region8
    $region5: #{tpu_custom_call.1} parent=1 // loop_body
      %s16 = ssub.s32 %s11, 1
      %s17 = ssub.s32 %s11, 2
      %s24 = sadd.s32 1, %s19
      %p25 = scmp.ge.s32.totalorder %s24, 2
      %s26 = scalar_select %p25, 0, %s24
      %s27 = sadd.s32 1, %s18
      %s28 = scalar_select %p25, %s27, %s18
      %p29 = scmp.ge.s32.totalorder %s28, 2
      %s30 = scalar_select %p29, 0, %s28
      %s31 = ssub.s32 %s18, %s30
      %s32 = ssub.s32 %s19, %s26
      %s33 = sor.u32 %s31, %s32
      %p34 = scmp.eq.s32.totalorder %s33, 0
      %s36 = sadd.s32 %s35, 1
      %s37 = scalar_select %p34, %s35, %s36
      %p40 = pneg %p34
      %p41 = scmp.eq.s32.totalorder %s11, 3
      %p42 = por %p40, %p41
      %p43 = scmp.ne.s32.totalorder %s35, %s38
      %p44 = scmp.eq.s32.totalorder %s11, 0
      %p45 = por %p43, %p44
      %p46 = scmp.ne.s32.totalorder %s35, %s38
      %p47 = scmp.eq.s32.totalorder %s16, 3
      %p48 = por %p46, %p47
      %p49 = scmp.ne.s32.totalorder %s38, %s39
      %p50 = scmp.eq.s32.totalorder %s16, 0
      %p51 = por %p49, %p50
      %p52 = scmp.ne.s32.totalorder %s38, %s39
      %p53 = scmp.eq.s32.totalorder %s17, 3
      %p54 = por %p52, %p53
      %p56 = scmp.ne.s32.totalorder %s39, %s55
      %p57 = scmp.eq.s32.totalorder %s17, 0
      %p58 = por %p56, %p57
      %s60 = sadd.s32 %s59, 1
      %p63 = scmp.eq.s32.totalorder %s11, 3
      %p64 = scmp.ne.s32.totalorder %s59, %s61
      %p65 = scmp.eq.s32.totalorder %s11, 0
      %p66 = por %p64, %p65
      %p67 = scmp.ne.s32.totalorder %s59, %s61
      %p68 = scmp.eq.s32.totalorder %s16, 3
      %p69 = por %p67, %p68
      %p70 = scmp.ne.s32.totalorder %s61, %s62
      %p71 = scmp.eq.s32.totalorder %s16, 0
      %p72 = por %p70, %p71
      %p73 = scmp.ne.s32.totalorder %s61, %s62
      %p74 = scmp.eq.s32.totalorder %s17, 3
      %p75 = por %p73, %p74
      %p77 = scmp.ne.s32.totalorder %s62, %s76
      %p78 = scmp.eq.s32.totalorder %s17, 0
      %p79 = por %p77, %p78
      %s80 = ssub.s32 %s18, %s30
      %s81 = ssub.s32 %s19, %s26
      %s82 = sor.u32 %s80, %s81
      %p83 = scmp.eq.s32.totalorder %s82, 0
      %s85 = sadd.s32 %s84, 1
      %s86 = scalar_select %p83, %s84, %s85
      %p89 = pneg %p83
      %p90 = scmp.eq.s32.totalorder %s11, 3
      %p91 = por %p89, %p90
      %p92 = scmp.ne.s32.totalorder %s84, %s87
      %p93 = scmp.eq.s32.totalorder %s11, 0
      %p94 = por %p92, %p93
      %p95 = scmp.ne.s32.totalorder %s84, %s87
      %p96 = scmp.eq.s32.totalorder %s16, 3
      %p97 = por %p95, %p96
      %p98 = scmp.ne.s32.totalorder %s87, %s88
      %p99 = scmp.eq.s32.totalorder %s16, 0
      %p100 = por %p98, %p99
      %p101 = scmp.ne.s32.totalorder %s87, %s88
      %p102 = scmp.eq.s32.totalorder %s17, 3
      %p103 = por %p101, %p102
      %p105 = scmp.ne.s32.totalorder %s88, %s104
      %p106 = scmp.eq.s32.totalorder %s17, 0
      %p107 = por %p105, %p106
      %p108 = scmp.le.s32.totalorder 1, %s11
      %p109 = scmp.lt.s32.totalorder %s11, 5
      %p110 = pnand %p108, %p109
      %p111 = pneg %p110
      // Predicated region
      $region9: #{tpu_custom_call.1} parent=5 // pred_check
        _
      $region10: #{tpu_custom_call.1} parent=5 // pred_check_branch
        %113 = sbr.rel (%p110) target = $region12
      $region11: #{tpu_custom_call.1} parent=5 // pred_region
        %s114 = ssub.s32 %s11, 1
        // Predicated region
        $region13: #{tpu_custom_call.1} parent=11 // pred_check
          %p115 = pneg %p72
        $region14: #{tpu_custom_call.1} parent=11 // pred_check_branch
          %117 = sbr.rel (%p115) target = $region16
        $region15: #{tpu_custom_call.1} parent=11 // pred_region
          _
        $region16: #{tpu_custom_call.1} parent=11 // pred_fallthru
          _
      $region12: #{tpu_custom_call.1} parent=5 // pred_fallthru
        _
      %p118 = scmp.lt.s32.totalorder %s11, 4
      // Predicated region
      $region17: #{tpu_custom_call.1} parent=5 // pred_check
        %p119 = pneg %p118
      $region18: #{tpu_custom_call.1} parent=5 // pred_check_branch
        %121 = sbr.rel (%p119) target = $region20
      $region19: #{tpu_custom_call.1} parent=5 // pred_region
        // Predicated region
        $region21: #{tpu_custom_call.1} parent=19 // pred_check
          %p122 = pneg %p45
        $region22: #{tpu_custom_call.1} parent=19 // pred_check_branch
          %124 = sbr.rel (%p122) target = $region24
        $region23: #{tpu_custom_call.1} parent=19 // pred_region
          %p125 = scmp.lt.s32.totalorder %s18, 1
          %s126 = scalar_select %p125, %s18, 1
          %p127 = scmp.lt.s32.totalorder %s19, 1
          %s128 = scalar_select %p127, %s19, 1
          %s129 = smul.addr %s128, 30
          %s130 = smul.addr %s126, 60
          %s131 = sadd.s32 %s129, %s130
          %s132 = smul.addr %s131, 4
          %s133 = scalar_lea.vmem %s0, %s132
        $region24: #{tpu_custom_call.1} parent=19 // pred_fallthru
          _
      $region20: #{tpu_custom_call.1} parent=5 // pred_fallthru
        _
      %p134 = scmp.le.s32.totalorder 1, %s11
      %p135 = scmp.lt.s32.totalorder %s11, 5
      %p136 = pnand %p134, %p135
      %p137 = pneg %p136
      // Predicated region
      $region25: #{tpu_custom_call.1} parent=5 // pred_check
        _
      $region26: #{tpu_custom_call.1} parent=5 // pred_check_branch
        %139 = sbr.rel (%p136) target = $region28
      $region27: #{tpu_custom_call.1} parent=5 // pred_region
        %s140 = ssub.s32 %s11, 1
        %p141 = scmp.lt.s32.totalorder %s20, 1
        %s142 = scalar_select %p141, %s20, 1
        %p143 = scmp.lt.s32.totalorder %s21, 1
        %s144 = scalar_select %p143, %s21, 1
        %s145 = smul.addr %s144, 30
        %s146 = smul.addr %s142, 60
        %s147 = sadd.s32 %s145, %s146
        %s148 = smul.addr %s147, 4
        %s149 = scalar_lea.vmem %s0, %s148
        %p150 = pneg %p51
        %p151 = pneg %p48
        %p152 = pneg %p72
        %p153 = pneg %p69
        %p154 = pneg %p100
        %p155 = pneg %p97
        %s156 = sand.u32 %s87, 1
        %s157 = scalar_lea.sflag [#allocation3], %s156
        %s158 = sand.u32 %s87, 1
        %s159 = smul.addr %s158, 128
        %s160 = scalar_lea.vmem [#allocation2], %s159
        %p161 = scmp.lt.s32.totalorder %s20, 1
        %s162 = scalar_select %p161, %s20, 1
        %p163 = scmp.lt.s32.totalorder %s21, 1
        %s164 = scalar_select %p163, %s21, 1
        %s165 = smul.addr %s164, 30
        %s166 = smul.addr %s162, 60
        %s167 = sadd.s32 %s165, %s166
        %s168 = smul.addr %s167, 4
        %s169 = scalar_lea.vmem %s0, %s168
        %s170 = smul.u32 16, %s21
        %v172 = vld [vmem:[%s169] sm:$0xf]
        %v173 = vld [vmem:[%s169 + $0x4] sm:$0xf]
        %v174 = vld [vmem:[%s169 + $0xc] sm:$0xf]
        %v175 = vld [vmem:[%s169 + $0x10] sm:$0xf]
        %v176 = vld [vmem:[%s169 + $0x18] sm:$0xf]
        %v177 = vld [vmem:[%s169 + $0x1c] sm:$0xf]
        %v178 = vld [vmem:[%s169 + $0x24] sm:$0xf]
        %v179 = vld [vmem:[%s169 + $0x28] sm:$0xf]
        %v180 = vld [vmem:[%s169 + $0x30] sm:$0xf]
        %v181 = vld [vmem:[%s169 + $0x34] sm:$0xf]
        %v182 = vld [vmem:[%s169 + $0x3c] sm:$0xf]
        %v183 = vld [vmem:[%s169 + $0x40] sm:$0xf]
        %v184 = vld [vmem:[%s169 + $0x48] sm:$0xf]
        %v185 = vld [vmem:[%s169 + $0x4c] sm:$0xf]
        %v186 = vld [vmem:[%s169 + $0x54] sm:$0xf]
        %v187 = vld [vmem:[%s169 + $0x58] sm:$0xf]
        %v188 = vld [vmem:[%s169 + $0x8] sm:$0x1]
        %v189 = vld [vmem:[%s169 + $0x14] sm:$0x1]
        %v190 = vld [vmem:[%s169 + $0x20] sm:$0x1]
        %v191 = vld [vmem:[%s169 + $0x2c] sm:$0x1]
        %v192 = vld [vmem:[%s169 + $0x38] sm:$0x1]
        %v193 = vld [vmem:[%s169 + $0x44] sm:$0x1]
        %v194 = vld [vmem:[%s169 + $0x50] sm:$0x1]
        %v195 = vld [vmem:[%s169 + $0x5c] sm:$0x1]
        %vm196 = vsmask.f32 3328
        %vm197 = vsmask.f32 7440
        %vm198 = vmor %vm196, %vm197
        %v200 = vshrl.u32 %v172, 16
        %v202 = vrot.slane %v200, 4
        %v203 = vshll.u32 %v172, 16
        %v205 = vrot.slane %v203, 5
        %v206 = vor.u32 %v202, %v205
        %v207 = vrot.slane %v206, 4
        %v209 = vshll.u32 %v173, 16
        %v211 = vrot.slane %v209, 5
        %v212 = vsel %vm198, %v207, %v211
        %v213 = vshrl.u32 %v173, 16
        %v215 = vrot.slane %v213, 4
        %v216 = vor.u32 %v215, %v211
        %v217 = vrot.slane %v216, 4
        %v219 = vshll.u32 %v188, 16
        %v221 = vrot.slane %v219, 5
        %v222 = vsel %vm198, %v217, %v221
        %v224 = vshrl.u32 %v174, 16
        %v226 = vrot.slane %v224, 4
        %v227 = vshll.u32 %v174, 16
        %v229 = vrot.slane %v227, 5
        %v230 = vor.u32 %v226, %v229
        %v231 = vrot.slane %v230, 4
        %v233 = vshll.u32 %v175, 16
        %v235 = vrot.slane %v233, 5
        %v236 = vsel %vm198, %v231, %v235
        %v237 = vshrl.u32 %v175, 16
        %v239 = vrot.slane %v237, 4
        %v240 = vor.u32 %v239, %v235
        %v241 = vrot.slane %v240, 4
        %v243 = vshll.u32 %v189, 16
        %v245 = vrot.slane %v243, 5
        %v246 = vsel %vm198, %v241, %v245
        %v248 = vshrl.u32 %v176, 16
        %v250 = vrot.slane %v248, 4
        %v251 = vshll.u32 %v176, 16
        %v253 = vrot.slane %v251, 5
        %v254 = vor.u32 %v250, %v253
        %v255 = vrot.slane %v254, 4
        %v257 = vshll.u32 %v177, 16
        %v259 = vrot.slane %v257, 5
        %v260 = vsel %vm198, %v255, %v259
        %v261 = vshrl.u32 %v177, 16
        %v263 = vrot.slane %v261, 4
        %v264 = vor.u32 %v263, %v259
        %v265 = vrot.slane %v264, 4
        %v267 = vshll.u32 %v190, 16
        %v269 = vrot.slane %v267, 5
        %v270 = vsel %vm198, %v265, %v269
        %v272 = vshrl.u32 %v178, 16
        %v274 = vrot.slane %v272, 4
        %v275 = vshll.u32 %v178, 16
        %v277 = vrot.slane %v275, 5
        %v278 = vor.u32 %v274, %v277
        %v279 = vrot.slane %v278, 4
        %v281 = vshll.u32 %v179, 16
        %v283 = vrot.slane %v281, 5
        %v284 = vsel %vm198, %v279, %v283
        %v285 = vshrl.u32 %v179, 16
        %v287 = vrot.slane %v285, 4
        %v288 = vor.u32 %v287, %v283
        %v289 = vrot.slane %v288, 4
        %v291 = vshll.u32 %v191, 16
        %v293 = vrot.slane %v291, 5
        %v294 = vsel %vm198, %v289, %v293
        %v296 = vshrl.u32 %v180, 16
        %v298 = vrot.slane %v296, 4
        %v299 = vshll.u32 %v180, 16
        %v301 = vrot.slane %v299, 5
        %v302 = vor.u32 %v298, %v301
        %v303 = vrot.slane %v302, 4
        %v305 = vshll.u32 %v181, 16
        %v307 = vrot.slane %v305, 5
        %v308 = vsel %vm198, %v303, %v307
        %v309 = vshrl.u32 %v181, 16
        %v311 = vrot.slane %v309, 4
        %v312 = vor.u32 %v311, %v307
        %v313 = vrot.slane %v312, 4
        %v315 = vshll.u32 %v192, 16
        %v317 = vrot.slane %v315, 5
        %v318 = vsel %vm198, %v313, %v317
        %v320 = vshrl.u32 %v182, 16
        %v322 = vrot.slane %v320, 4
        %v323 = vshll.u32 %v182, 16
        %v325 = vrot.slane %v323, 5
        %v326 = vor.u32 %v322, %v325
        %v327 = vrot.slane %v326, 4
        %v329 = vshll.u32 %v183, 16
        %v331 = vrot.slane %v329, 5
        %v332 = vsel %vm198, %v327, %v331
        %v333 = vshrl.u32 %v183, 16
        %v335 = vrot.slane %v333, 4
        %v336 = vor.u32 %v335, %v331
        %v337 = vrot.slane %v336, 4
        %v339 = vshll.u32 %v193, 16
        %v341 = vrot.slane %v339, 5
        %v342 = vsel %vm198, %v337, %v341
        %v344 = vshrl.u32 %v184, 16
        %v346 = vrot.slane %v344, 4
        %v347 = vshll.u32 %v184, 16
        %v349 = vrot.slane %v347, 5
        %v350 = vor.u32 %v346, %v349
        %v351 = vrot.slane %v350, 4
        %v353 = vshll.u32 %v185, 16
        %v355 = vrot.slane %v353, 5
        %v356 = vsel %vm198, %v351, %v355
        %v357 = vshrl.u32 %v185, 16
        %v359 = vrot.slane %v357, 4
        %v360 = vor.u32 %v359, %v355
        %v361 = vrot.slane %v360, 4
        %v363 = vshll.u32 %v194, 16
        %v365 = vrot.slane %v363, 5
        %v366 = vsel %vm198, %v361, %v365
        %v368 = vshrl.u32 %v186, 16
        %v370 = vrot.slane %v368, 4
        %v371 = vshll.u32 %v186, 16
        %v373 = vrot.slane %v371, 5
        %v374 = vor.u32 %v370, %v373
        %v375 = vrot.slane %v374, 4
        %v377 = vshll.u32 %v187, 16
        %v379 = vrot.slane %v377, 5
        %v380 = vsel %vm198, %v375, %v379
        %v381 = vshrl.u32 %v187, 16
        %v383 = vrot.slane %v381, 4
        %v384 = vor.u32 %v383, %v379
        %v385 = vrot.slane %v384, 4
        %v387 = vshll.u32 %v195, 16
        %v389 = vrot.slane %v387, 5
        %v390 = vsel %vm198, %v385, %v389
        %v391 = vld [vmem:[%s169] sm:$0xe]
        %v392 = vld [vmem:[%s169 + $0xc] sm:$0xe]
        %v393 = vld [vmem:[%s169 + $0x18] sm:$0xe]
        %v394 = vld [vmem:[%s169 + $0x24] sm:$0xe]
        %v395 = vld [vmem:[%s169 + $0x30] sm:$0xe]
        %v396 = vld [vmem:[%s169 + $0x3c] sm:$0xe]
        %v397 = vld [vmem:[%s169 + $0x48] sm:$0xe]
        %v398 = vld [vmem:[%s169 + $0x54] sm:$0xe]
        %vm423 = vcmask 1042432
        %vm424 = vcmask 1046532
        %vm425 = vmor %vm423, %vm424
        %v426 = vrot.slane %v391, 5
        %v427 = vrot.slane %v426, 4
        %v428 = vrot.slane %v173, 5
        %v429 = vsel %vm425, %v427, %v428
        %v430 = vrot.slane %v428, 4
        %v431 = vrot.slane %v188, 5
        %v432 = vsel %vm425, %v430, %v431
        %v433 = vrot.slane %v392, 5
        %v434 = vrot.slane %v433, 4
        %v435 = vrot.slane %v175, 5
        %v436 = vsel %vm425, %v434, %v435
        %v437 = vrot.slane %v435, 4
        %v438 = vrot.slane %v189, 5
        %v439 = vsel %vm425, %v437, %v438
        %v440 = vrot.slane %v393, 5
        %v441 = vrot.slane %v440, 4
        %v442 = vrot.slane %v177, 5
        %v443 = vsel %vm425, %v441, %v442
        %v444 = vrot.slane %v442, 4
        %v445 = vrot.slane %v190, 5
        %v446 = vsel %vm425, %v444, %v445
        %v447 = vrot.slane %v394, 5
        %v448 = vrot.slane %v447, 4
        %v449 = vrot.slane %v179, 5
        %v450 = vsel %vm425, %v448, %v449
        %v451 = vrot.slane %v449, 4
        %v452 = vrot.slane %v191, 5
        %v453 = vsel %vm425, %v451, %v452
        %v454 = vrot.slane %v395, 5
        %v455 = vrot.slane %v454, 4
        %v456 = vrot.slane %v181, 5
        %v457 = vsel %vm425, %v455, %v456
        %v458 = vrot.slane %v456, 4
        %v459 = vrot.slane %v192, 5
        %v460 = vsel %vm425, %v458, %v459
        %v461 = vrot.slane %v396, 5
        %v462 = vrot.slane %v461, 4
        %v463 = vrot.slane %v183, 5
        %v464 = vsel %vm425, %v462, %v463
        %v465 = vrot.slane %v463, 4
        %v466 = vrot.slane %v193, 5
        %v467 = vsel %vm425, %v465, %v466
        %v468 = vrot.slane %v397, 5
        %v469 = vrot.slane %v468, 4
        %v470 = vrot.slane %v185, 5
        %v471 = vsel %vm425, %v469, %v470
        %v472 = vrot.slane %v470, 4
        %v473 = vrot.slane %v194, 5
        %v474 = vsel %vm425, %v472, %v473
        %v475 = vrot.slane %v398, 5
        %v476 = vrot.slane %v475, 4
        %v477 = vrot.slane %v187, 5
        %v478 = vsel %vm425, %v476, %v477
        %v479 = vrot.slane %v477, 4
        %v480 = vrot.slane %v195, 5
        %v481 = vsel %vm425, %v479, %v480
        %s482 = scalar_lea.vmem %s169, 12
        %v483 = vld [vmem:[%s482] sm:$0xf]
        %v484 = vld [vmem:[%s482 + $0x4] sm:$0xf]
        %v485 = vld [vmem:[%s482 + $0xc] sm:$0xf]
        %v486 = vld [vmem:[%s482 + $0x10] sm:$0xf]
        %v487 = vld [vmem:[%s482 + $0x18] sm:$0xf]
        %v488 = vld [vmem:[%s482 + $0x1c] sm:$0xf]
        %v489 = vld [vmem:[%s482 + $0x24] sm:$0xf]
        %v490 = vld [vmem:[%s482 + $0x28] sm:$0xf]
        %v491 = vld [vmem:[%s482 + $0x30] sm:$0xf]
        %v492 = vld [vmem:[%s482 + $0x34] sm:$0xf]
        %v493 = vld [vmem:[%s482 + $0x3c] sm:$0xf]
        %v494 = vld [vmem:[%s482 + $0x40] sm:$0xf]
        %v495 = vld [vmem:[%s482 + $0x48] sm:$0xf]
        %v496 = vld [vmem:[%s482 + $0x4c] sm:$0xf]
        %v497 = vld [vmem:[%s482 + $0x54] sm:$0xf]
        %v498 = vld [vmem:[%s482 + $0x58] sm:$0xf]
        %v499 = vld [vmem:[%s482 + $0x8] sm:$0x1]
        %v500 = vld [vmem:[%s482 + $0x14] sm:$0x1]
        %v501 = vld [vmem:[%s482 + $0x20] sm:$0x1]
        %v502 = vld [vmem:[%s482 + $0x2c] sm:$0x1]
        %v503 = vld [vmem:[%s482 + $0x38] sm:$0x1]
        %v504 = vld [vmem:[%s482 + $0x44] sm:$0x1]
        %v505 = vld [vmem:[%s482 + $0x50] sm:$0x1]
        %v506 = vld [vmem:[%s482 + $0x5c] sm:$0x1]
        %v508 = vshrl.u32 %v483, 16
        %v510 = vrot.slane %v508, 4
        %v511 = vshll.u32 %v483, 16
        %v513 = vrot.slane %v511, 5
        %v514 = vor.u32 %v510, %v513
        %v515 = vrot.slane %v514, 4
        %v517 = vshll.u32 %v484, 16
        %v519 = vrot.slane %v517, 5
        %v520 = vsel %vm198, %v515, %v519
        %v521 = vshrl.u32 %v484, 16
        %v523 = vrot.slane %v521, 4
        %v524 = vor.u32 %v523, %v519
        %v525 = vrot.slane %v524, 4
        %v527 = vshll.u32 %v499, 16
        %v529 = vrot.slane %v527, 5
        %v530 = vsel %vm198, %v525, %v529
        %v532 = vshrl.u32 %v485, 16
        %v534 = vrot.slane %v532, 4
        %v535 = vshll.u32 %v485, 16
        %v537 = vrot.slane %v535, 5
        %v538 = vor.u32 %v534, %v537
        %v539 = vrot.slane %v538, 4
        %v541 = vshll.u32 %v486, 16
        %v543 = vrot.slane %v541, 5
        %v544 = vsel %vm198, %v539, %v543
        %v545 = vshrl.u32 %v486, 16
        %v547 = vrot.slane %v545, 4
        %v548 = vor.u32 %v547, %v543
        %v549 = vrot.slane %v548, 4
        %v551 = vshll.u32 %v500, 16
        %v553 = vrot.slane %v551, 5
        %v554 = vsel %vm198, %v549, %v553
        %v556 = vshrl.u32 %v487, 16
        %v558 = vrot.slane %v556, 4
        %v559 = vshll.u32 %v487, 16
        %v561 = vrot.slane %v559, 5
        %v562 = vor.u32 %v558, %v561
        %v563 = vrot.slane %v562, 4
        %v565 = vshll.u32 %v488, 16
        %v567 = vrot.slane %v565, 5
        %v568 = vsel %vm198, %v563, %v567
        %v569 = vshrl.u32 %v488, 16
        %v571 = vrot.slane %v569, 4
        %v572 = vor.u32 %v571, %v567
        %v573 = vrot.slane %v572, 4
        %v575 = vshll.u32 %v501, 16
        %v577 = vrot.slane %v575, 5
        %v578 = vsel %vm198, %v573, %v577
        %v580 = vshrl.u32 %v489, 16
        %v582 = vrot.slane %v580, 4
        %v583 = vshll.u32 %v489, 16
        %v585 = vrot.slane %v583, 5
        %v586 = vor.u32 %v582, %v585
        %v587 = vrot.slane %v586, 4
        %v589 = vshll.u32 %v490, 16
        %v591 = vrot.slane %v589, 5
        %v592 = vsel %vm198, %v587, %v591
        %v593 = vshrl.u32 %v490, 16
        %v595 = vrot.slane %v593, 4
        %v596 = vor.u32 %v595, %v591
        %v597 = vrot.slane %v596, 4
        %v599 = vshll.u32 %v502, 16
        %v601 = vrot.slane %v599, 5
        %v602 = vsel %vm198, %v597, %v601
        %v604 = vshrl.u32 %v491, 16
        %v606 = vrot.slane %v604, 4
        %v607 = vshll.u32 %v491, 16
        %v609 = vrot.slane %v607, 5
        %v610 = vor.u32 %v606, %v609
        %v611 = vrot.slane %v610, 4
        %v613 = vshll.u32 %v492, 16
        %v615 = vrot.slane %v613, 5
        %v616 = vsel %vm198, %v611, %v615
        %v617 = vshrl.u32 %v492, 16
        %v619 = vrot.slane %v617, 4
        %v620 = vor.u32 %v619, %v615
        %v621 = vrot.slane %v620, 4
        %v623 = vshll.u32 %v503, 16
        %v625 = vrot.slane %v623, 5
        %v626 = vsel %vm198, %v621, %v625
        %v628 = vshrl.u32 %v493, 16
        %v630 = vrot.slane %v628, 4
        %v631 = vshll.u32 %v493, 16
        %v633 = vrot.slane %v631, 5
        %v634 = vor.u32 %v630, %v633
        %v635 = vrot.slane %v634, 4
        %v637 = vshll.u32 %v494, 16
        %v639 = vrot.slane %v637, 5
        %v640 = vsel %vm198, %v635, %v639
        %v641 = vshrl.u32 %v494, 16
        %v643 = vrot.slane %v641, 4
        %v644 = vor.u32 %v643, %v639
        %v645 = vrot.slane %v644, 4
        %v647 = vshll.u32 %v504, 16
        %v649 = vrot.slane %v647, 5
        %v650 = vsel %vm198, %v645, %v649
        %v652 = vshrl.u32 %v495, 16
        %v654 = vrot.slane %v652, 4
        %v655 = vshll.u32 %v495, 16
        %v657 = vrot.slane %v655, 5
        %v658 = vor.u32 %v654, %v657
        %v659 = vrot.slane %v658, 4
        %v661 = vshll.u32 %v496, 16
        %v663 = vrot.slane %v661, 5
        %v664 = vsel %vm198, %v659, %v663
        %v665 = vshrl.u32 %v496, 16
        %v667 = vrot.slane %v665, 4
        %v668 = vor.u32 %v667, %v663
        %v669 = vrot.slane %v668, 4
        %v671 = vshll.u32 %v505, 16
        %v673 = vrot.slane %v671, 5
        %v674 = vsel %vm198, %v669, %v673
        %v676 = vshrl.u32 %v497, 16
        %v678 = vrot.slane %v676, 4
        %v679 = vshll.u32 %v497, 16
        %v681 = vrot.slane %v679, 5
        %v682 = vor.u32 %v678, %v681
        %v683 = vrot.slane %v682, 4
        %v685 = vshll.u32 %v498, 16
        %v687 = vrot.slane %v685, 5
        %v688 = vsel %vm198, %v683, %v687
        %v689 = vshrl.u32 %v498, 16
        %v691 = vrot.slane %v689, 4
        %v692 = vor.u32 %v691, %v687
        %v693 = vrot.slane %v692, 4
        %v695 = vshll.u32 %v506, 16
        %v697 = vrot.slane %v695, 5
        %v698 = vsel %vm198, %v693, %v697
        %v699 = vld [vmem:[%s482] sm:$0xe]
        %v700 = vld [vmem:[%s482 + $0xc] sm:$0xe]
        %v701 = vld [vmem:[%s482 + $0x18] sm:$0xe]
        %v702 = vld [vmem:[%s482 + $0x24] sm:$0xe]
        %v703 = vld [vmem:[%s482 + $0x30] sm:$0xe]
        %v704 = vld [vmem:[%s482 + $0x3c] sm:$0xe]
        %v705 = vld [vmem:[%s482 + $0x48] sm:$0xe]
        %v706 = vld [vmem:[%s482 + $0x54] sm:$0xe]
        %v731 = vrot.slane %v699, 5
        %v732 = vrot.slane %v731, 4
        %v733 = vrot.slane %v484, 5
        %v734 = vsel %vm425, %v732, %v733
        %v735 = vrot.slane %v733, 4
        %v736 = vrot.slane %v499, 5
        %v737 = vsel %vm425, %v735, %v736
        %v738 = vrot.slane %v700, 5
        %v739 = vrot.slane %v738, 4
        %v740 = vrot.slane %v486, 5
        %v741 = vsel %vm425, %v739, %v740
        %v742 = vrot.slane %v740, 4
        %v743 = vrot.slane %v500, 5
        %v744 = vsel %vm425, %v742, %v743
        %v745 = vrot.slane %v701, 5
        %v746 = vrot.slane %v745, 4
        %v747 = vrot.slane %v488, 5
        %v748 = vsel %vm425, %v746, %v747
        %v749 = vrot.slane %v747, 4
        %v750 = vrot.slane %v501, 5
        %v751 = vsel %vm425, %v749, %v750
        %v752 = vrot.slane %v702, 5
        %v753 = vrot.slane %v752, 4
        %v754 = vrot.slane %v490, 5
        %v755 = vsel %vm425, %v753, %v754
        %v756 = vrot.slane %v754, 4
        %v757 = vrot.slane %v502, 5
        %v758 = vsel %vm425, %v756, %v757
        %v759 = vrot.slane %v703, 5
        %v760 = vrot.slane %v759, 4
        %v761 = vrot.slane %v492, 5
        %v762 = vsel %vm425, %v760, %v761
        %v763 = vrot.slane %v761, 4
        %v764 = vrot.slane %v503, 5
        %v765 = vsel %vm425, %v763, %v764
        %v766 = vrot.slane %v704, 5
        %v767 = vrot.slane %v766, 4
        %v768 = vrot.slane %v494, 5
        %v769 = vsel %vm425, %v767, %v768
        %v770 = vrot.slane %v768, 4
        %v771 = vrot.slane %v504, 5
        %v772 = vsel %vm425, %v770, %v771
        %v773 = vrot.slane %v705, 5
        %v774 = vrot.slane %v773, 4
        %v775 = vrot.slane %v496, 5
        %v776 = vsel %vm425, %v774, %v775
        %v777 = vrot.slane %v775, 4
        %v778 = vrot.slane %v505, 5
        %v779 = vsel %vm425, %v777, %v778
        %v780 = vrot.slane %v706, 5
        %v781 = vrot.slane %v780, 4
        %v782 = vrot.slane %v498, 5
        %v783 = vsel %vm425, %v781, %v782
        %v784 = vrot.slane %v782, 4
        %v785 = vrot.slane %v506, 5
        %v786 = vsel %vm425, %v784, %v785
        %s787 = scalar_lea.vmem %s169, 24
        %v788 = vld [vmem:[%s787] sm:$0xf]
        %v789 = vld [vmem:[%s787 + $0x4] sm:$0xf]
        %v790 = vld [vmem:[%s787 + $0xc] sm:$0xf]
        %v791 = vld [vmem:[%s787 + $0x10] sm:$0xf]
        %v792 = vld [vmem:[%s787 + $0x18] sm:$0xf]
        %v793 = vld [vmem:[%s787 + $0x1c] sm:$0xf]
        %v794 = vld [vmem:[%s787 + $0x24] sm:$0xf]
        %v795 = vld [vmem:[%s787 + $0x28] sm:$0xf]
        %v796 = vld [vmem:[%s787 + $0x30] sm:$0xf]
        %v797 = vld [vmem:[%s787 + $0x34] sm:$0xf]
        %v798 = vld [vmem:[%s787 + $0x3c] sm:$0xf]
        %v799 = vld [vmem:[%s787 + $0x40] sm:$0xf]
        %v800 = vld [vmem:[%s787 + $0x48] sm:$0xf]
        %v801 = vld [vmem:[%s787 + $0x4c] sm:$0xf]
        %v802 = vld [vmem:[%s787 + $0x54] sm:$0xf]
        %v803 = vld [vmem:[%s787 + $0x58] sm:$0xf]
        %v804 = vld [vmem:[%s787 + $0x8] sm:$0x1]
        %v805 = vld [vmem:[%s787 + $0x14] sm:$0x1]
        %v806 = vld [vmem:[%s787 + $0x20] sm:$0x1]
        %v807 = vld [vmem:[%s787 + $0x2c] sm:$0x1]
        %v808 = vld [vmem:[%s787 + $0x38] sm:$0x1]
        %v809 = vld [vmem:[%s787 + $0x44] sm:$0x1]
        %v810 = vld [vmem:[%s787 + $0x50] sm:$0x1]
        %v811 = vld [vmem:[%s787 + $0x5c] sm:$0x1]
        %v813 = vshrl.u32 %v788, 16
        %v815 = vrot.slane %v813, 4
        %v816 = vshll.u32 %v788, 16
        %v818 = vrot.slane %v816, 5
        %v819 = vor.u32 %v815, %v818
        %v820 = vrot.slane %v819, 4
        %v822 = vshll.u32 %v789, 16
        %v824 = vrot.slane %v822, 5
        %v825 = vsel %vm198, %v820, %v824
        %v826 = vshrl.u32 %v789, 16
        %v828 = vrot.slane %v826, 4
        %v829 = vor.u32 %v828, %v824
        %v830 = vrot.slane %v829, 4
        %v832 = vshll.u32 %v804, 16
        %v834 = vrot.slane %v832, 5
        %v835 = vsel %vm198, %v830, %v834
        %v837 = vshrl.u32 %v790, 16
        %v839 = vrot.slane %v837, 4
        %v840 = vshll.u32 %v790, 16
        %v842 = vrot.slane %v840, 5
        %v843 = vor.u32 %v839, %v842
        %v844 = vrot.slane %v843, 4
        %v846 = vshll.u32 %v791, 16
        %v848 = vrot.slane %v846, 5
        %v849 = vsel %vm198, %v844, %v848
        %v850 = vshrl.u32 %v791, 16
        %v852 = vrot.slane %v850, 4
        %v853 = vor.u32 %v852, %v848
        %v854 = vrot.slane %v853, 4
        %v856 = vshll.u32 %v805, 16
        %v858 = vrot.slane %v856, 5
        %v859 = vsel %vm198, %v854, %v858
        %v861 = vshrl.u32 %v792, 16
        %v863 = vrot.slane %v861, 4
        %v864 = vshll.u32 %v792, 16
        %v866 = vrot.slane %v864, 5
        %v867 = vor.u32 %v863, %v866
        %v868 = vrot.slane %v867, 4
        %v870 = vshll.u32 %v793, 16
        %v872 = vrot.slane %v870, 5
        %v873 = vsel %vm198, %v868, %v872
        %v874 = vshrl.u32 %v793, 16
        %v876 = vrot.slane %v874, 4
        %v877 = vor.u32 %v876, %v872
        %v878 = vrot.slane %v877, 4
        %v880 = vshll.u32 %v806, 16
        %v882 = vrot.slane %v880, 5
        %v883 = vsel %vm198, %v878, %v882
        %v885 = vshrl.u32 %v794, 16
        %v887 = vrot.slane %v885, 4
        %v888 = vshll.u32 %v794, 16
        %v890 = vrot.slane %v888, 5
        %v891 = vor.u32 %v887, %v890
        %v892 = vrot.slane %v891, 4
        %v894 = vshll.u32 %v795, 16
        %v896 = vrot.slane %v894, 5
        %v897 = vsel %vm198, %v892, %v896
        %v898 = vshrl.u32 %v795, 16
        %v900 = vrot.slane %v898, 4
        %v901 = vor.u32 %v900, %v896
        %v902 = vrot.slane %v901, 4
        %v904 = vshll.u32 %v807, 16
        %v906 = vrot.slane %v904, 5
        %v907 = vsel %vm198, %v902, %v906
        %v909 = vshrl.u32 %v796, 16
        %v911 = vrot.slane %v909, 4
        %v912 = vshll.u32 %v796, 16
        %v914 = vrot.slane %v912, 5
        %v915 = vor.u32 %v911, %v914
        %v916 = vrot.slane %v915, 4
        %v918 = vshll.u32 %v797, 16
        %v920 = vrot.slane %v918, 5
        %v921 = vsel %vm198, %v916, %v920
        %v922 = vshrl.u32 %v797, 16
        %v924 = vrot.slane %v922, 4
        %v925 = vor.u32 %v924, %v920
        %v926 = vrot.slane %v925, 4
        %v928 = vshll.u32 %v808, 16
        %v930 = vrot.slane %v928, 5
        %v931 = vsel %vm198, %v926, %v930
        %v933 = vshrl.u32 %v798, 16
        %v935 = vrot.slane %v933, 4
        %v936 = vshll.u32 %v798, 16
        %v938 = vrot.slane %v936, 5
        %v939 = vor.u32 %v935, %v938
        %v940 = vrot.slane %v939, 4
        %v942 = vshll.u32 %v799, 16
        %v944 = vrot.slane %v942, 5
        %v945 = vsel %vm198, %v940, %v944
        %v946 = vshrl.u32 %v799, 16
        %v948 = vrot.slane %v946, 4
        %v949 = vor.u32 %v948, %v944
        %v950 = vrot.slane %v949, 4
        %v952 = vshll.u32 %v809, 16
        %v954 = vrot.slane %v952, 5
        %v955 = vsel %vm198, %v950, %v954
        %v957 = vshrl.u32 %v800, 16
        %v959 = vrot.slane %v957, 4
        %v960 = vshll.u32 %v800, 16
        %v962 = vrot.slane %v960, 5
        %v963 = vor.u32 %v959, %v962
        %v964 = vrot.slane %v963, 4
        %v966 = vshll.u32 %v801, 16
        %v968 = vrot.slane %v966, 5
        %v969 = vsel %vm198, %v964, %v968
        %v970 = vshrl.u32 %v801, 16
        %v972 = vrot.slane %v970, 4
        %v973 = vor.u32 %v972, %v968
        %v974 = vrot.slane %v973, 4
        %v976 = vshll.u32 %v810, 16
        %v978 = vrot.slane %v976, 5
        %v979 = vsel %vm198, %v974, %v978
        %v981 = vshrl.u32 %v802, 16
        %v983 = vrot.slane %v981, 4
        %v984 = vshll.u32 %v802, 16
        %v986 = vrot.slane %v984, 5
        %v987 = vor.u32 %v983, %v986
        %v988 = vrot.slane %v987, 4
        %v990 = vshll.u32 %v803, 16
        %v992 = vrot.slane %v990, 5
        %v993 = vsel %vm198, %v988, %v992
        %v994 = vshrl.u32 %v803, 16
        %v996 = vrot.slane %v994, 4
        %v997 = vor.u32 %v996, %v992
        %v998 = vrot.slane %v997, 4
        %v1000 = vshll.u32 %v811, 16
        %v1002 = vrot.slane %v1000, 5
        %v1003 = vsel %vm198, %v998, %v1002
        %v1004 = vld [vmem:[%s787] sm:$0xe]
        %v1005 = vld [vmem:[%s787 + $0xc] sm:$0xe]
        %v1006 = vld [vmem:[%s787 + $0x18] sm:$0xe]
        %v1007 = vld [vmem:[%s787 + $0x24] sm:$0xe]
        %v1008 = vld [vmem:[%s787 + $0x30] sm:$0xe]
        %v1009 = vld [vmem:[%s787 + $0x3c] sm:$0xe]
        %v1010 = vld [vmem:[%s787 + $0x48] sm:$0xe]
        %v1011 = vld [vmem:[%s787 + $0x54] sm:$0xe]
        %v1036 = vrot.slane %v1004, 5
        %v1037 = vrot.slane %v1036, 4
        %v1038 = vrot.slane %v789, 5
        %v1039 = vsel %vm425, %v1037, %v1038
        %v1040 = vrot.slane %v1038, 4
        %v1041 = vrot.slane %v804, 5
        %v1042 = vsel %vm425, %v1040, %v1041
        %v1043 = vrot.slane %v1005, 5
        %v1044 = vrot.slane %v1043, 4
        %v1045 = vrot.slane %v791, 5
        %v1046 = vsel %vm425, %v1044, %v1045
        %v1047 = vrot.slane %v1045, 4
        %v1048 = vrot.slane %v805, 5
        %v1049 = vsel %vm425, %v1047, %v1048
        %v1050 = vrot.slane %v1006, 5
        %v1051 = vrot.slane %v1050, 4
        %v1052 = vrot.slane %v793, 5
        %v1053 = vsel %vm425, %v1051, %v1052
        %v1054 = vrot.slane %v1052, 4
        %v1055 = vrot.slane %v806, 5
        %v1056 = vsel %vm425, %v1054, %v1055
        %v1057 = vrot.slane %v1007, 5
        %v1058 = vrot.slane %v1057, 4
        %v1059 = vrot.slane %v795, 5
        %v1060 = vsel %vm425, %v1058, %v1059
        %v1061 = vrot.slane %v1059, 4
        %v1062 = vrot.slane %v807, 5
        %v1063 = vsel %vm425, %v1061, %v1062
        %v1064 = vrot.slane %v1008, 5
        %v1065 = vrot.slane %v1064, 4
        %v1066 = vrot.slane %v797, 5
        %v1067 = vsel %vm425, %v1065, %v1066
        %v1068 = vrot.slane %v1066, 4
        %v1069 = vrot.slane %v808, 5
        %v1070 = vsel %vm425, %v1068, %v1069
        %v1071 = vrot.slane %v1009, 5
        %v1072 = vrot.slane %v1071, 4
        %v1073 = vrot.slane %v799, 5
        %v1074 = vsel %vm425, %v1072, %v1073
        %v1075 = vrot.slane %v1073, 4
        %v1076 = vrot.slane %v809, 5
        %v1077 = vsel %vm425, %v1075, %v1076
        %v1078 = vrot.slane %v1010, 5
        %v1079 = vrot.slane %v1078, 4
        %v1080 = vrot.slane %v801, 5
        %v1081 = vsel %vm425, %v1079, %v1080
        %v1082 = vrot.slane %v1080, 4
        %v1083 = vrot.slane %v810, 5
        %v1084 = vsel %vm425, %v1082, %v1083
        %v1085 = vrot.slane %v1011, 5
        %v1086 = vrot.slane %v1085, 4
        %v1087 = vrot.slane %v803, 5
        %v1088 = vsel %vm425, %v1086, %v1087
        %v1089 = vrot.slane %v1087, 4
        %v1090 = vrot.slane %v811, 5
        %v1091 = vsel %vm425, %v1089, %v1090
        %v1100 = vunpack.c.l.b16 %v172
        %v1101 = vunpack.c.l.b16 %v173
        %v1102 = vunpack.c.l.b16 %v174
        %v1103 = vunpack.c.l.b16 %v175
        %v1104 = vunpack.c.l.b16 %v176
        %v1105 = vunpack.c.l.b16 %v177
        %v1106 = vunpack.c.l.b16 %v178
        %v1107 = vunpack.c.l.b16 %v179
        %v1108 = vunpack.c.l.b16 %v180
        %v1109 = vunpack.c.l.b16 %v181
        %v1110 = vunpack.c.l.b16 %v182
        %v1111 = vunpack.c.l.b16 %v183
        %v1112 = vunpack.c.l.b16 %v184
        %v1113 = vunpack.c.l.b16 %v185
        %v1114 = vunpack.c.l.b16 %v186
        %v1115 = vunpack.c.l.b16 %v187
        %v1116 = vpack.c.b16 %v1101, %v1100
        %v1117 = vpack.c.b16 %v1103, %v1102
        %v1118 = vpack.c.b16 %v1105, %v1104
        %v1119 = vpack.c.b16 %v1107, %v1106
        %v1120 = vpack.c.b16 %v1109, %v1108
        %v1121 = vpack.c.b16 %v1111, %v1110
        %v1122 = vpack.c.b16 %v1113, %v1112
        %v1123 = vpack.c.b16 %v1115, %v1114
        %v1124 = vunpack.c.l.b16 %v212
        %v1125 = vunpack.c.l.b16 %v222
        %v1126 = vunpack.c.l.b16 %v236
        %v1127 = vunpack.c.l.b16 %v246
        %v1128 = vunpack.c.l.b16 %v260
        %v1129 = vunpack.c.l.b16 %v270
        %v1130 = vunpack.c.l.b16 %v284
        %v1131 = vunpack.c.l.b16 %v294
        %v1132 = vunpack.c.l.b16 %v308
        %v1133 = vunpack.c.l.b16 %v318
        %v1134 = vunpack.c.l.b16 %v332
        %v1135 = vunpack.c.l.b16 %v342
        %v1136 = vunpack.c.l.b16 %v356
        %v1137 = vunpack.c.l.b16 %v366
        %v1138 = vunpack.c.l.b16 %v380
        %v1139 = vunpack.c.l.b16 %v390
        %v1140 = vpack.c.b16 %v1125, %v1124
        %v1141 = vpack.c.b16 %v1127, %v1126
        %v1142 = vpack.c.b16 %v1129, %v1128
        %v1143 = vpack.c.b16 %v1131, %v1130
        %v1144 = vpack.c.b16 %v1133, %v1132
        %v1145 = vpack.c.b16 %v1135, %v1134
        %v1146 = vpack.c.b16 %v1137, %v1136
        %v1147 = vpack.c.b16 %v1139, %v1138
        %1148 = vrot.lane.b32.xlu0 %v1140, 4
        %v1149 = vpop.permute.xlu0 %1148
        %1150 = vrot.lane.b32.xlu0 %v1141, 4
        %v1151 = vpop.permute.xlu0 %1150
        %1152 = vrot.lane.b32.xlu0 %v1142, 4
        %v1153 = vpop.permute.xlu0 %1152
        %1154 = vrot.lane.b32.xlu0 %v1143, 4
        %v1155 = vpop.permute.xlu0 %1154
        %1156 = vrot.lane.b32.xlu0 %v1144, 4
        %v1157 = vpop.permute.xlu0 %1156
        %1158 = vrot.lane.b32.xlu0 %v1145, 4
        %v1159 = vpop.permute.xlu0 %1158
        %1160 = vrot.lane.b32.xlu0 %v1146, 4
        %v1161 = vpop.permute.xlu0 %1160
        %1162 = vrot.lane.b32.xlu0 %v1147, 4
        %v1163 = vpop.permute.xlu0 %1162
        %v1164 = vunpack.c.l.b16 %v429
        %v1165 = vunpack.c.l.b16 %v432
        %v1166 = vunpack.c.l.b16 %v436
        %v1167 = vunpack.c.l.b16 %v439
        %v1168 = vunpack.c.l.b16 %v443
        %v1169 = vunpack.c.l.b16 %v446
        %v1170 = vunpack.c.l.b16 %v450
        %v1171 = vunpack.c.l.b16 %v453
        %v1172 = vunpack.c.l.b16 %v457
        %v1173 = vunpack.c.l.b16 %v460
        %v1174 = vunpack.c.l.b16 %v464
        %v1175 = vunpack.c.l.b16 %v467
        %v1176 = vunpack.c.l.b16 %v471
        %v1177 = vunpack.c.l.b16 %v474
        %v1178 = vunpack.c.l.b16 %v478
        %v1179 = vunpack.c.l.b16 %v481
        %v1180 = vpack.c.b16 %v1165, %v1164
        %v1181 = vpack.c.b16 %v1167, %v1166
        %v1182 = vpack.c.b16 %v1169, %v1168
        %v1183 = vpack.c.b16 %v1171, %v1170
        %v1184 = vpack.c.b16 %v1173, %v1172
        %v1185 = vpack.c.b16 %v1175, %v1174
        %v1186 = vpack.c.b16 %v1177, %v1176
        %v1187 = vpack.c.b16 %v1179, %v1178
        %1188 = vrot.lane.b32.xlu0 %v1180, 8
        %v1189 = vpop.permute.xlu0 %1188
        %1190 = vrot.lane.b32.xlu0 %v1181, 8
        %v1191 = vpop.permute.xlu0 %1190
        %1192 = vrot.lane.b32.xlu0 %v1182, 8
        %v1193 = vpop.permute.xlu0 %1192
        %1194 = vrot.lane.b32.xlu0 %v1183, 8
        %v1195 = vpop.permute.xlu0 %1194
        %1196 = vrot.lane.b32.xlu0 %v1184, 8
        %v1197 = vpop.permute.xlu0 %1196
        %1198 = vrot.lane.b32.xlu0 %v1185, 8
        %v1199 = vpop.permute.xlu0 %1198
        %1200 = vrot.lane.b32.xlu0 %v1186, 8
        %v1201 = vpop.permute.xlu0 %1200
        %1202 = vrot.lane.b32.xlu0 %v1187, 8
        %v1203 = vpop.permute.xlu0 %1202
        %v1212 = vunpack.c.l.b16 %v483
        %v1213 = vunpack.c.l.b16 %v484
        %v1214 = vunpack.c.l.b16 %v485
        %v1215 = vunpack.c.l.b16 %v486
        %v1216 = vunpack.c.l.b16 %v487
        %v1217 = vunpack.c.l.b16 %v488
        %v1218 = vunpack.c.l.b16 %v489
        %v1219 = vunpack.c.l.b16 %v490
        %v1220 = vunpack.c.l.b16 %v491
        %v1221 = vunpack.c.l.b16 %v492
        %v1222 = vunpack.c.l.b16 %v493
        %v1223 = vunpack.c.l.b16 %v494
        %v1224 = vunpack.c.l.b16 %v495
        %v1225 = vunpack.c.l.b16 %v496
        %v1226 = vunpack.c.l.b16 %v497
        %v1227 = vunpack.c.l.b16 %v498
        %v1228 = vpack.c.b16 %v1213, %v1212
        %v1229 = vpack.c.b16 %v1215, %v1214
        %v1230 = vpack.c.b16 %v1217, %v1216
        %v1231 = vpack.c.b16 %v1219, %v1218
        %v1232 = vpack.c.b16 %v1221, %v1220
        %v1233 = vpack.c.b16 %v1223, %v1222
        %v1234 = vpack.c.b16 %v1225, %v1224
        %v1235 = vpack.c.b16 %v1227, %v1226
        %1236 = vrot.lane.b32.xlu0 %v1228, 12
        %v1237 = vpop.permute.xlu0 %1236
        %1238 = vrot.lane.b32.xlu0 %v1229, 12
        %v1239 = vpop.permute.xlu0 %1238
        %1240 = vrot.lane.b32.xlu0 %v1230, 12
        %v1241 = vpop.permute.xlu0 %1240
        %1242 = vrot.lane.b32.xlu0 %v1231, 12
        %v1243 = vpop.permute.xlu0 %1242
        %1244 = vrot.lane.b32.xlu0 %v1232, 12
        %v1245 = vpop.permute.xlu0 %1244
        %1246 = vrot.lane.b32.xlu0 %v1233, 12
        %v1247 = vpop.permute.xlu0 %1246
        %1248 = vrot.lane.b32.xlu0 %v1234, 12
        %v1249 = vpop.permute.xlu0 %1248
        %1250 = vrot.lane.b32.xlu0 %v1235, 12
        %v1251 = vpop.permute.xlu0 %1250
        %v1252 = vunpack.c.l.b16 %v520
        %v1253 = vunpack.c.l.b16 %v530
        %v1254 = vunpack.c.l.b16 %v544
        %v1255 = vunpack.c.l.b16 %v554
        %v1256 = vunpack.c.l.b16 %v568
        %v1257 = vunpack.c.l.b16 %v578
        %v1258 = vunpack.c.l.b16 %v592
        %v1259 = vunpack.c.l.b16 %v602
        %v1260 = vunpack.c.l.b16 %v616
        %v1261 = vunpack.c.l.b16 %v626
        %v1262 = vunpack.c.l.b16 %v640
        %v1263 = vunpack.c.l.b16 %v650
        %v1264 = vunpack.c.l.b16 %v664
        %v1265 = vunpack.c.l.b16 %v674
        %v1266 = vunpack.c.l.b16 %v688
        %v1267 = vunpack.c.l.b16 %v698
        %v1268 = vpack.c.b16 %v1253, %v1252
        %v1269 = vpack.c.b16 %v1255, %v1254
        %v1270 = vpack.c.b16 %v1257, %v1256
        %v1271 = vpack.c.b16 %v1259, %v1258
        %v1272 = vpack.c.b16 %v1261, %v1260
        %v1273 = vpack.c.b16 %v1263, %v1262
        %v1274 = vpack.c.b16 %v1265, %v1264
        %v1275 = vpack.c.b16 %v1267, %v1266
        %1276 = vrot.lane.b32.xlu0 %v1268, 16
        %v1277 = vpop.permute.xlu0 %1276
        %1278 = vrot.lane.b32.xlu0 %v1269, 16
        %v1279 = vpop.permute.xlu0 %1278
        %1280 = vrot.lane.b32.xlu0 %v1270, 16
        %v1281 = vpop.permute.xlu0 %1280
        %1282 = vrot.lane.b32.xlu0 %v1271, 16
        %v1283 = vpop.permute.xlu0 %1282
        %1284 = vrot.lane.b32.xlu0 %v1272, 16
        %v1285 = vpop.permute.xlu0 %1284
        %1286 = vrot.lane.b32.xlu0 %v1273, 16
        %v1287 = vpop.permute.xlu0 %1286
        %1288 = vrot.lane.b32.xlu0 %v1274, 16
        %v1289 = vpop.permute.xlu0 %1288
        %1290 = vrot.lane.b32.xlu0 %v1275, 16
        %v1291 = vpop.permute.xlu0 %1290
        %v1292 = vunpack.c.l.b16 %v734
        %v1293 = vunpack.c.l.b16 %v737
        %v1294 = vunpack.c.l.b16 %v741
        %v1295 = vunpack.c.l.b16 %v744
        %v1296 = vunpack.c.l.b16 %v748
        %v1297 = vunpack.c.l.b16 %v751
        %v1298 = vunpack.c.l.b16 %v755
        %v1299 = vunpack.c.l.b16 %v758
        %v1300 = vunpack.c.l.b16 %v762
        %v1301 = vunpack.c.l.b16 %v765
        %v1302 = vunpack.c.l.b16 %v769
        %v1303 = vunpack.c.l.b16 %v772
        %v1304 = vunpack.c.l.b16 %v776
        %v1305 = vunpack.c.l.b16 %v779
        %v1306 = vunpack.c.l.b16 %v783
        %v1307 = vunpack.c.l.b16 %v786
        %v1308 = vpack.c.b16 %v1293, %v1292
        %v1309 = vpack.c.b16 %v1295, %v1294
        %v1310 = vpack.c.b16 %v1297, %v1296
        %v1311 = vpack.c.b16 %v1299, %v1298
        %v1312 = vpack.c.b16 %v1301, %v1300
        %v1313 = vpack.c.b16 %v1303, %v1302
        %v1314 = vpack.c.b16 %v1305, %v1304
        %v1315 = vpack.c.b16 %v1307, %v1306
        %1316 = vrot.lane.b32.xlu0 %v1308, 20
        %v1317 = vpop.permute.xlu0 %1316
        %1318 = vrot.lane.b32.xlu0 %v1309, 20
        %v1319 = vpop.permute.xlu0 %1318
        %1320 = vrot.lane.b32.xlu0 %v1310, 20
        %v1321 = vpop.permute.xlu0 %1320
        %1322 = vrot.lane.b32.xlu0 %v1311, 20
        %v1323 = vpop.permute.xlu0 %1322
        %1324 = vrot.lane.b32.xlu0 %v1312, 20
        %v1325 = vpop.permute.xlu0 %1324
        %1326 = vrot.lane.b32.xlu0 %v1313, 20
        %v1327 = vpop.permute.xlu0 %1326
        %1328 = vrot.lane.b32.xlu0 %v1314, 20
        %v1329 = vpop.permute.xlu0 %1328
        %1330 = vrot.lane.b32.xlu0 %v1315, 20
        %v1331 = vpop.permute.xlu0 %1330
        %v1340 = vunpack.c.l.b16 %v788
        %v1341 = vunpack.c.l.b16 %v789
        %v1342 = vunpack.c.l.b16 %v790
        %v1343 = vunpack.c.l.b16 %v791
        %v1344 = vunpack.c.l.b16 %v792
        %v1345 = vunpack.c.l.b16 %v793
        %v1346 = vunpack.c.l.b16 %v794
        %v1347 = vunpack.c.l.b16 %v795
        %v1348 = vunpack.c.l.b16 %v796
        %v1349 = vunpack.c.l.b16 %v797
        %v1350 = vunpack.c.l.b16 %v798
        %v1351 = vunpack.c.l.b16 %v799
        %v1352 = vunpack.c.l.b16 %v800
        %v1353 = vunpack.c.l.b16 %v801
        %v1354 = vunpack.c.l.b16 %v802
        %v1355 = vunpack.c.l.b16 %v803
        %v1356 = vpack.c.b16 %v1341, %v1340
        %v1357 = vpack.c.b16 %v1343, %v1342
        %v1358 = vpack.c.b16 %v1345, %v1344
        %v1359 = vpack.c.b16 %v1347, %v1346
        %v1360 = vpack.c.b16 %v1349, %v1348
        %v1361 = vpack.c.b16 %v1351, %v1350
        %v1362 = vpack.c.b16 %v1353, %v1352
        %v1363 = vpack.c.b16 %v1355, %v1354
        %1364 = vrot.lane.b32.xlu0 %v1356, 24
        %v1365 = vpop.permute.xlu0 %1364
        %1366 = vrot.lane.b32.xlu0 %v1357, 24
        %v1367 = vpop.permute.xlu0 %1366
        %1368 = vrot.lane.b32.xlu0 %v1358, 24
        %v1369 = vpop.permute.xlu0 %1368
        %1370 = vrot.lane.b32.xlu0 %v1359, 24
        %v1371 = vpop.permute.xlu0 %1370
        %1372 = vrot.lane.b32.xlu0 %v1360, 24
        %v1373 = vpop.permute.xlu0 %1372
        %1374 = vrot.lane.b32.xlu0 %v1361, 24
        %v1375 = vpop.permute.xlu0 %1374
        %1376 = vrot.lane.b32.xlu0 %v1362, 24
        %v1377 = vpop.permute.xlu0 %1376
        %1378 = vrot.lane.b32.xlu0 %v1363, 24
        %v1379 = vpop.permute.xlu0 %1378
        %v1380 = vunpack.c.l.b16 %v825
        %v1381 = vunpack.c.l.b16 %v835
        %v1382 = vunpack.c.l.b16 %v849
        %v1383 = vunpack.c.l.b16 %v859
        %v1384 = vunpack.c.l.b16 %v873
        %v1385 = vunpack.c.l.b16 %v883
        %v1386 = vunpack.c.l.b16 %v897
        %v1387 = vunpack.c.l.b16 %v907
        %v1388 = vunpack.c.l.b16 %v921
        %v1389 = vunpack.c.l.b16 %v931
        %v1390 = vunpack.c.l.b16 %v945
        %v1391 = vunpack.c.l.b16 %v955
        %v1392 = vunpack.c.l.b16 %v969
        %v1393 = vunpack.c.l.b16 %v979
        %v1394 = vunpack.c.l.b16 %v993
        %v1395 = vunpack.c.l.b16 %v1003
        %v1396 = vpack.c.b16 %v1381, %v1380
        %v1397 = vpack.c.b16 %v1383, %v1382
        %v1398 = vpack.c.b16 %v1385, %v1384
        %v1399 = vpack.c.b16 %v1387, %v1386
        %v1400 = vpack.c.b16 %v1389, %v1388
        %v1401 = vpack.c.b16 %v1391, %v1390
        %v1402 = vpack.c.b16 %v1393, %v1392
        %v1403 = vpack.c.b16 %v1395, %v1394
        %1404 = vrot.lane.b32.xlu0 %v1396, 28
        %v1405 = vpop.permute.xlu0 %1404
        %1406 = vrot.lane.b32.xlu0 %v1397, 28
        %v1407 = vpop.permute.xlu0 %1406
        %1408 = vrot.lane.b32.xlu0 %v1398, 28
        %v1409 = vpop.permute.xlu0 %1408
        %1410 = vrot.lane.b32.xlu0 %v1399, 28
        %v1411 = vpop.permute.xlu0 %1410
        %1412 = vrot.lane.b32.xlu0 %v1400, 28
        %v1413 = vpop.permute.xlu0 %1412
        %1414 = vrot.lane.b32.xlu0 %v1401, 28
        %v1415 = vpop.permute.xlu0 %1414
        %1416 = vrot.lane.b32.xlu0 %v1402, 28
        %v1417 = vpop.permute.xlu0 %1416
        %1418 = vrot.lane.b32.xlu0 %v1403, 28
        %v1419 = vpop.permute.xlu0 %1418
        %v1420 = vunpack.c.l.b16 %v1039
        %v1421 = vunpack.c.l.b16 %v1042
        %v1422 = vunpack.c.l.b16 %v1046
        %v1423 = vunpack.c.l.b16 %v1049
        %v1424 = vunpack.c.l.b16 %v1053
        %v1425 = vunpack.c.l.b16 %v1056
        %v1426 = vunpack.c.l.b16 %v1060
        %v1427 = vunpack.c.l.b16 %v1063
        %v1428 = vunpack.c.l.b16 %v1067
        %v1429 = vunpack.c.l.b16 %v1070
        %v1430 = vunpack.c.l.b16 %v1074
        %v1431 = vunpack.c.l.b16 %v1077
        %v1432 = vunpack.c.l.b16 %v1081
        %v1433 = vunpack.c.l.b16 %v1084
        %v1434 = vunpack.c.l.b16 %v1088
        %v1435 = vunpack.c.l.b16 %v1091
        %v1436 = vpack.c.b16 %v1421, %v1420
        %v1437 = vpack.c.b16 %v1423, %v1422
        %v1438 = vpack.c.b16 %v1425, %v1424
        %v1439 = vpack.c.b16 %v1427, %v1426
        %v1440 = vpack.c.b16 %v1429, %v1428
        %v1441 = vpack.c.b16 %v1431, %v1430
        %v1442 = vpack.c.b16 %v1433, %v1432
        %v1443 = vpack.c.b16 %v1435, %v1434
        %1444 = vrot.lane.b32.xlu0 %v1436, 32
        %v1445 = vpop.permute.xlu0 %1444
        %1446 = vrot.lane.b32.xlu0 %v1437, 32
        %v1447 = vpop.permute.xlu0 %1446
        %1448 = vrot.lane.b32.xlu0 %v1438, 32
        %v1449 = vpop.permute.xlu0 %1448
        %1450 = vrot.lane.b32.xlu0 %v1439, 32
        %v1451 = vpop.permute.xlu0 %1450
        %1452 = vrot.lane.b32.xlu0 %v1440, 32
        %v1453 = vpop.permute.xlu0 %1452
        %1454 = vrot.lane.b32.xlu0 %v1441, 32
        %v1455 = vpop.permute.xlu0 %1454
        %1456 = vrot.lane.b32.xlu0 %v1442, 32
        %v1457 = vpop.permute.xlu0 %1456
        %1458 = vrot.lane.b32.xlu0 %v1443, 32
        %v1459 = vpop.permute.xlu0 %1458
        %vm1460 = vcmask 31744
        %v1463 = vsel %vm1460, %v1116, %v1149
        %v1466 = vsel %vm1460, %v1117, %v1151
        %v1469 = vsel %vm1460, %v1118, %v1153
        %v1472 = vsel %vm1460, %v1119, %v1155
        %v1475 = vsel %vm1460, %v1120, %v1157
        %v1478 = vsel %vm1460, %v1121, %v1159
        %v1481 = vsel %vm1460, %v1122, %v1161
        %v1484 = vsel %vm1460, %v1123, %v1163
        %vm1485 = vcmask 64512
        %v1487 = vsel %vm1485, %v1463, %v1189
        %v1489 = vsel %vm1485, %v1466, %v1191
        %v1491 = vsel %vm1485, %v1469, %v1193
        %v1493 = vsel %vm1485, %v1472, %v1195
        %v1495 = vsel %vm1485, %v1475, %v1197
        %v1497 = vsel %vm1485, %v1478, %v1199
        %v1499 = vsel %vm1485, %v1481, %v1201
        %v1501 = vsel %vm1485, %v1484, %v1203
        %vm1502 = vcmask 97280
        %v1504 = vsel %vm1502, %v1487, %v1237
        %v1506 = vsel %vm1502, %v1489, %v1239
        %v1508 = vsel %vm1502, %v1491, %v1241
        %v1510 = vsel %vm1502, %v1493, %v1243
        %v1512 = vsel %vm1502, %v1495, %v1245
        %v1514 = vsel %vm1502, %v1497, %v1247
        %v1516 = vsel %vm1502, %v1499, %v1249
        %v1518 = vsel %vm1502, %v1501, %v1251
        %vm1519 = vcmask 130048
        %v1521 = vsel %vm1519, %v1504, %v1277
        %v1523 = vsel %vm1519, %v1506, %v1279
        %v1525 = vsel %vm1519, %v1508, %v1281
        %v1527 = vsel %vm1519, %v1510, %v1283
        %v1529 = vsel %vm1519, %v1512, %v1285
        %v1531 = vsel %vm1519, %v1514, %v1287
        %v1533 = vsel %vm1519, %v1516, %v1289
        %v1535 = vsel %vm1519, %v1518, %v1291
        %vm1536 = vcmask 162816
        %v1538 = vsel %vm1536, %v1521, %v1317
        %v1540 = vsel %vm1536, %v1523, %v1319
        %v1542 = vsel %vm1536, %v1525, %v1321
        %v1544 = vsel %vm1536, %v1527, %v1323
        %v1546 = vsel %vm1536, %v1529, %v1325
        %v1548 = vsel %vm1536, %v1531, %v1327
        %v1550 = vsel %vm1536, %v1533, %v1329
        %v1552 = vsel %vm1536, %v1535, %v1331
        %vm1553 = vcmask 195584
        %v1555 = vsel %vm1553, %v1538, %v1365
        %v1557 = vsel %vm1553, %v1540, %v1367
        %v1559 = vsel %vm1553, %v1542, %v1369
        %v1561 = vsel %vm1553, %v1544, %v1371
        %v1563 = vsel %vm1553, %v1546, %v1373
        %v1565 = vsel %vm1553, %v1548, %v1375
        %v1567 = vsel %vm1553, %v1550, %v1377
        %v1569 = vsel %vm1553, %v1552, %v1379
        %vm1570 = vcmask 228352
        %v1572 = vsel %vm1570, %v1555, %v1405
        %v1574 = vsel %vm1570, %v1557, %v1407
        %v1576 = vsel %vm1570, %v1559, %v1409
        %v1578 = vsel %vm1570, %v1561, %v1411
        %v1580 = vsel %vm1570, %v1563, %v1413
        %v1582 = vsel %vm1570, %v1565, %v1415
        %v1584 = vsel %vm1570, %v1567, %v1417
        %v1586 = vsel %vm1570, %v1569, %v1419
        %vm1587 = vcmask 261120
        %v1589 = vsel %vm1587, %v1572, %v1445
        %v1591 = vsel %vm1587, %v1574, %v1447
        %v1593 = vsel %vm1587, %v1576, %v1449
        %v1595 = vsel %vm1587, %v1578, %v1451
        %v1597 = vsel %vm1587, %v1580, %v1453
        %v1599 = vsel %vm1587, %v1582, %v1455
        %v1601 = vsel %vm1587, %v1584, %v1457
        %v1603 = vsel %vm1587, %v1586, %v1459
        %v1604 = vld [vmem:[%s1] sm:$0xf]
        %v1605 = vld [vmem:[%s1 + $0x4] sm:$0xf]
        %v1606 = vld [vmem:[%s1 + $0x8] sm:$0xf]
        %v1607 = vld [vmem:[%s1 + $0xc] sm:$0xf]
        %v1608 = vld [vmem:[%s1 + $0x10] sm:$0x3]
        %v1614 = vunpack.c.l.b16 %v1604
        %v1615 = vunpack.c.l.b16 %v1605
        %v1616 = vunpack.c.l.b16 %v1606
        %v1617 = vunpack.c.l.b16 %v1607
        %v1618 = vunpack.c.l.b16 %v1608
        %v1619 = vpack.c.b16 %v1615, %v1614
        %v1620 = vpack.c.b16 %v1617, %v1616
        %v1621 = vpack.c.b16 %v1618, %v1618
        %vm1624 = vcmask 293888
        %v1625 = vsel %vm1624, %v1589, 0
        %v1627 = vsel %vm1624, %v1591, 0
        %v1629 = vsel %vm1624, %v1593, 0
        %v1631 = vsel %vm1624, %v1595, 0
        %v1633 = vsel %vm1624, %v1597, 0
        %v1635 = vsel %vm1624, %v1599, 0
        %v1637 = vsel %vm1624, %v1601, 0
        %v1639 = vsel %vm1624, %v1603, 0
        %vm1641 = vcmask 1041408
        %v1643 = vsel %vm1641, %v1621, 0
        %1645 = vmatprep.subr.bf16.mxu0 0
        %1646 = vmatpush1.bf16.msra.mxu0 0
        %1647 = vmatprep.subr.bf16.mxu0 0
        %1648 = vmatpush1.bf16.msra.mxu0 0
        %1649 = vmatprep.subr.bf16.mxu0 0
        %1650 = vmatpush1.bf16.msra.mxu0 0
        %1651 = vmatprep.subr.bf16.mxu0 0
        %1652 = vmatpush1.bf16.msra.mxu0 0
        %1653 = vmatprep.subr.bf16.mxu0 0
        %1654 = vmatpush1.bf16.msra.mxu0 0
        %1655 = vmatprep.subr.bf16.mxu0 0
        %1656 = vmatpush1.bf16.msra.mxu0 %v1643
        %1657 = vmatprep.subr.bf16.mxu0 0
        %1658 = vmatpush1.bf16.msra.mxu0 %v1620
        %1659 = vmatprep.subr.bf16.mxu0 0
        %1660 = vmatpush1.bf16.msra.mxu0 %v1619
        %1661 = vmatprep.subr.bf16.mxu0 0
        %1662 = vmatpush2.bf16.msra.mxu0 0
        %1663 = vmatprep.subr.bf16.mxu0 0
        %1664 = vmatpush2.bf16.msra.mxu0 0
        %1665 = vmatprep.subr.bf16.mxu0 0
        %1666 = vmatpush2.bf16.msra.mxu0 0
        %1667 = vmatprep.subr.bf16.mxu0 0
        %1668 = vmatpush2.bf16.msra.mxu0 0
        %1669 = vmatprep.subr.bf16.mxu0 0
        %1670 = vmatpush2.bf16.msra.mxu0 0
        %1671 = vmatprep.subr.bf16.mxu0 0
        %1672 = vmatpush2.bf16.msra.mxu0 0
        %1673 = vmatprep.subr.bf16.mxu0 0
        %1674 = vmatpush2.bf16.msra.mxu0 0
        %1675 = vmatprep.subr.bf16.mxu0 0
        %1676 = vmatpush2.bf16.msra.mxu0 0
        %1677 = vmatprep.mubr.bf16.mxu0 0
        %1678 = vmatmul.mubr.bf16.gmra.mxu0 %v1625
        %v1679 = vpop.f32.mrf.mxu0
        %v1680 = vadd.f32 0.0, %v1679
        %v1681 = vpop.f32.mrf.mxu0
        %v1682 = vpop.f32.mrf.mxu0
        %v1683 = vadd.f32 0.0, %v1682
        %v1684 = vpop.f32.mrf.mxu0
        %1685 = vmatprep.mubr.bf16.mxu0 0
        %1686 = vmatmul.mubr.bf16.gmra.mxu0 %v1627
        %v1687 = vpop.f32.mrf.mxu0
        %v1688 = vadd.f32 0.0, %v1687
        %v1689 = vpop.f32.mrf.mxu0
        %v1690 = vpop.f32.mrf.mxu0
        %v1691 = vadd.f32 0.0, %v1690
        %v1692 = vpop.f32.mrf.mxu0
        %1693 = vmatprep.mubr.bf16.mxu0 0
        %1694 = vmatmul.mubr.bf16.gmra.mxu0 %v1629
        %v1695 = vpop.f32.mrf.mxu0
        %v1696 = vadd.f32 0.0, %v1695
        %v1697 = vpop.f32.mrf.mxu0
        %v1698 = vpop.f32.mrf.mxu0
        %v1699 = vadd.f32 0.0, %v1698
        %v1700 = vpop.f32.mrf.mxu0
        %1701 = vmatprep.mubr.bf16.mxu0 0
        %1702 = vmatmul.mubr.bf16.gmra.mxu0 %v1631
        %v1703 = vpop.f32.mrf.mxu0
        %v1704 = vadd.f32 0.0, %v1703
        %v1705 = vpop.f32.mrf.mxu0
        %v1706 = vpop.f32.mrf.mxu0
        %v1707 = vadd.f32 0.0, %v1706
        %v1708 = vpop.f32.mrf.mxu0
        %1709 = vmatprep.mubr.bf16.mxu0 0
        %1710 = vmatmul.mubr.bf16.gmra.mxu0 %v1633
        %v1711 = vpop.f32.mrf.mxu0
        %v1712 = vadd.f32 0.0, %v1711
        %v1713 = vpop.f32.mrf.mxu0
        %v1714 = vpop.f32.mrf.mxu0
        %v1715 = vadd.f32 0.0, %v1714
        %v1716 = vpop.f32.mrf.mxu0
        %1717 = vmatprep.mubr.bf16.mxu0 0
        %1718 = vmatmul.mubr.bf16.gmra.mxu0 %v1635
        %v1719 = vpop.f32.mrf.mxu0
        %v1720 = vadd.f32 0.0, %v1719
        %v1721 = vpop.f32.mrf.mxu0
        %v1722 = vpop.f32.mrf.mxu0
        %v1723 = vadd.f32 0.0, %v1722
        %v1724 = vpop.f32.mrf.mxu0
        %1725 = vmatprep.mubr.bf16.mxu0 0
        %1726 = vmatmul.mubr.bf16.gmra.mxu0 %v1637
        %v1727 = vpop.f32.mrf.mxu0
        %v1728 = vadd.f32 0.0, %v1727
        %v1729 = vpop.f32.mrf.mxu0
        %v1730 = vpop.f32.mrf.mxu0
        %v1731 = vadd.f32 0.0, %v1730
        %v1732 = vpop.f32.mrf.mxu0
        %1733 = vmatprep.mubr.bf16.mxu0 0
        %1734 = vmatmul.mubr.bf16.gmra.mxu0 %v1639
        %v1735 = vpop.f32.mrf.mxu0
        %v1736 = vadd.f32 0.0, %v1735
        %v1737 = vpop.f32.mrf.mxu0
        %v1738 = vpop.f32.mrf.mxu0
        %v1739 = vadd.f32 0.0, %v1738
        %v1740 = vpop.f32.mrf.mxu0
        %1741 = vdwg.mxu0
        %1742 = vst [vmem:[%s160] sm:$0xff] %v1680
        %1743 = vst [vmem:[%s160 + $0x8] sm:$0xff] %v1683
        %1744 = vst [vmem:[%s160 + $0x10] sm:$0xff] %v1688
        %1745 = vst [vmem:[%s160 + $0x18] sm:$0xff] %v1691
        %1746 = vst [vmem:[%s160 + $0x20] sm:$0xff] %v1696
        %1747 = vst [vmem:[%s160 + $0x28] sm:$0xff] %v1699
        %1748 = vst [vmem:[%s160 + $0x30] sm:$0xff] %v1704
        %1749 = vst [vmem:[%s160 + $0x38] sm:$0xff] %v1707
        %1750 = vst [vmem:[%s160 + $0x40] sm:$0xff] %v1712
        %1751 = vst [vmem:[%s160 + $0x48] sm:$0xff] %v1715
        %1752 = vst [vmem:[%s160 + $0x50] sm:$0xff] %v1720
        %1753 = vst [vmem:[%s160 + $0x58] sm:$0xff] %v1723
        %1754 = vst [vmem:[%s160 + $0x60] sm:$0xff] %v1728
        %1755 = vst [vmem:[%s160 + $0x68] sm:$0xff] %v1731
        %1756 = vst [vmem:[%s160 + $0x70] sm:$0xff] %v1736
        %1757 = vst [vmem:[%s160 + $0x78] sm:$0xff] %v1739
        %s1758 = sand.u32 %s87, 1
        %s1759 = scalar_lea.sflag [#allocation3], %s1758
        %s1760 = sand.u32 %s87, 1
        %s1761 = smul.addr %s1760, 128
        %s1762 = scalar_lea.vmem [#allocation2], %s1761
        // Predicated region
        $region29: #{tpu_custom_call.1} parent=27 // pred_check
          %p1763 = pneg %p97
        $region30: #{tpu_custom_call.1} parent=27 // pred_check_branch
          %1765 = sbr.rel (%p1763) target = $region32
        $region31: #{tpu_custom_call.1} parent=27 // pred_region
          %s1766 = smul.u32 16, %s21
          %s1768 = ssub.s32 2048, 2048
          %1769 = vsyncadd %s1759, %s1768
          %s1770 = smul.addr %s20, 32
          %s1771 = sadd.s32 %s1766, %s1770
          %s1772 = smul.addr %s1771, 128
          %s1773 = scalar_lea.hbm %s2, %s1772
          %s1774 = sshll.u32 %s1762, 4
          %s1775 = int_to_ptr.vmem [resolvable:$true] %s1774
          %1780 = dma.vmem_to_hbm [thread:$0]  %s1775, 2048, %s1773, %s1759, 128, 128, 8
        $region32: #{tpu_custom_call.1} parent=27 // pred_fallthru
          _
      $region28: #{tpu_custom_call.1} parent=5 // pred_fallthru
        _
      %p1781 = scmp.le.s32.totalorder 2, %s11
      // Predicated region
      $region33: #{tpu_custom_call.1} parent=5 // pred_check
        %p1782 = pneg %p1781
      $region34: #{tpu_custom_call.1} parent=5 // pred_check_branch
        %1784 = sbr.rel (%p1782) target = $region36
      $region35: #{tpu_custom_call.1} parent=5 // pred_region
        %s1785 = ssub.s32 %s11, 2
        // Predicated region
        $region37: #{tpu_custom_call.1} parent=35 // pred_check
          %p1786 = pneg %p103
        $region38: #{tpu_custom_call.1} parent=35 // pred_check_branch
          %1788 = sbr.rel (%p1786) target = $region40
        $region39: #{tpu_custom_call.1} parent=35 // pred_region
          %s1789 = sand.u32 %s88, 1
          %s1790 = scalar_lea.sflag [#allocation3], %s1789
          %s1791 = sand.u32 %s88, 1
          %s1792 = smul.addr %s1791, 128
          %s1793 = scalar_lea.vmem [#allocation2], %s1792
          %1794 = dma.done %s1790, 2048
        $region40: #{tpu_custom_call.1} parent=35 // pred_fallthru
          _
      $region36: #{tpu_custom_call.1} parent=5 // pred_fallthru
        _
    $region6: #{tpu_custom_call.1} parent=1 // loop_footer
      %s15 = sadd.s32 1, %s11
    $region7: #{tpu_custom_call.1} parent=1 // loop_footer_branch
      %10 = sbr.rel target = $region3
    $region8: #{tpu_custom_call.1} parent=1 // loop_exit
      _
    %1795 = vsyncpa [#allocation3], 1
    %s1796 = scalar_lea.sflag [#allocation3], 1
    %1797 = vsyncpa %s1796, 1

</llo_original>
